<compile_context>
chip_gen: v7x
topology: tpu7x:2x2x1
jax: 0.10.0
libtpu: 0.0.40
codegen_flags: <defaults>
</compile_context>

<pallas_src>
import math
from functools import partial

import jax
import jax.numpy as jnp
import numpy as np
from jax import lax
from jax.experimental import pallas as pl
from jax.experimental.pallas import tpu as pltpu


def _gp_kernel(x_ref, w_ref, b_ref, cos_ref, sin_ref, mq_ref, mk_ref,
               o_ref, bias_vmem, *, head_size, heads_per_group,
               compute_dtype, tri_penalty):
    """One (batch, head-group) tile: wide proj -> RoPE -> per-head q@k^T -> +bias."""
    Dh = head_size
    G = heads_per_group
    hh = Dh // 2

    # --- per-batch additive bias (sequence mask + triangular penalty), built
    #     once at head-group 0 and reused across all head groups of this batch.
    @pl.when(pl.program_id(1) == 0)
    def _():
        n = bias_vmem.shape[0]
        row = lax.broadcasted_iota(jnp.int32, (n, n), 0)
        col = lax.broadcasted_iota(jnp.int32, (n, n), 1)
        tri = jnp.where(row > col, jnp.float32(tri_penalty), jnp.float32(0.0))
        valid = (mq_ref[0] * mk_ref[0]) > 0.0            # (N,1)*(1,N) -> (N,N)
        # NOTE: -inf matches the reference semantics ('-inf' sequence_masking);
        # switch to a large finite value if downstream cannot tolerate inf.
        bias_vmem[...] = jnp.where(valid, tri, jnp.float32(-jnp.inf))

    # --- fused projection: a single wide MXU matmul for G heads x (q, k) -----
    proj = jnp.dot(x_ref[0], w_ref[0],
                   preferred_element_type=jnp.float32) + b_ref[0]   # (N, W) f32

    # --- RoPE in rotate-half (deinterleaved) layout: columns are [even | odd].
    #     cos/sin tables are pre-scaled by Dh**-0.25 so logits come out already
    #     divided by sqrt(Dh).
    half = proj.shape[-1] // 2
    ev, od = proj[:, :half], proj[:, half:]
    cos, sin = cos_ref[...], sin_ref[...]                # (N, W//2) f32
    r_ev = (ev * cos - od * sin).astype(compute_dtype)
    r_od = (od * cos + ev * sin).astype(compute_dtype)

    bias = bias_vmem[...]
    nt = (((1,), (1,)), ((), ()))                        # 'md,nd->mn'
    for g in range(G):                                   # static, small G
        q0, q1, k1 = 2 * g * hh, (2 * g + 1) * hh, (2 * g + 2) * hh
        logits = lax.dot_general(r_ev[:, q0:q1], r_ev[:, q1:k1], nt,
                                 preferred_element_type=jnp.float32)
        logits += lax.dot_general(r_od[:, q0:q1], r_od[:, q1:k1], nt,
                                  preferred_element_type=jnp.float32)
        o_ref[0, g] = (logits + bias).astype(o_ref.dtype)


def global_pointer(x, weight, bias, mask, *, head_num, head_size,
                   heads_per_group=None, compute_dtype=jnp.bfloat16,
                   out_dtype=jnp.float32, vmem_limit_bytes=None):
    """x: (B, N, D_in); weight: (D_in, H*2*Dh) (y = x @ W + b); bias: (H*2*Dh,);
    mask: (B, N).  Returns logits (B, H, N, N), matching 'bmhd,bnhd->bhmn'."""
    B, N, Din = x.shape
    H, Dh = head_num, head_size
    assert Dh % 2 == 0
    assert weight.shape == (Din, H * 2 * Dh)
    hh = Dh // 2

    # --- choose heads-per-group so the fused matmul width is MXU friendly ----
    G = heads_per_group
    if G is None:
        G = H
        for g in range(1, H + 1):
            if H % g == 0 and g * 2 * Dh >= 256:
                G = g
                break
    assert H % G == 0
    HG = H // G
    W = G * 2 * Dh

    # --- glue: column permutation of the dense weight -------------------------
    # New layout per head group: [ even RoPE components of (h0q, h0k, h1q, ...) |
    #                              odd  RoPE components in the same order      ]
    cols = []
    for hg in range(HG):
        for par in (0, 1):                       # 0: even components, 1: odd
            for j in range(2 * G):               # (q, k) per head, head-major
                h = hg * G + j // 2
                base = h * 2 * Dh + (j % 2) * Dh
                cols.extend(range(base + par, base + Dh, 2))
    perm = np.asarray(cols, dtype=np.int32)

    wf = jnp.take(weight, perm, axis=1).reshape(Din, HG, W)
    wf = jnp.transpose(wf, (1, 0, 2)).astype(compute_dtype)       # (HG, Din, W)
    bf = jnp.take(bias, perm).reshape(HG, 1, W).astype(jnp.float32)
    x_c = x.astype(compute_dtype)

    # --- glue: RoPE tables (SinusoidalPositionEmbedding(head_size, 'zero')) ---
    pos = jnp.arange(N, dtype=jnp.float32)
    idx = jnp.arange(hh, dtype=jnp.float32)
    inv_freq = jnp.power(10000.0, -2.0 * idx / Dh)                # (Dh/2,)
    ang = pos[:, None] * inv_freq[None, :]                        # (N, Dh/2)
    scale = float(Dh) ** -0.25          # folded 1/sqrt(Dh): applied to q and k
    cos_t = jnp.tile(jnp.cos(ang) * scale, (1, 2 * G))            # (N, W//2)
    sin_t = jnp.tile(jnp.sin(ang) * scale, (1, 2 * G))            # (N, W//2)

    m = mask.astype(jnp.float32)
    mq = m.reshape(B, N, 1)
    mk = m.reshape(B, 1, N)

    tri_penalty = -1e12 / math.sqrt(Dh)

    cp_kwargs = dict(dimension_semantics=("parallel", "arbitrary"))
    if vmem_limit_bytes is not None:
        cp_kwargs["vmem_limit_bytes"] = vmem_limit_bytes

    kernel = partial(_gp_kernel, head_size=Dh, heads_per_group=G,
                     compute_dtype=compute_dtype, tri_penalty=tri_penalty)
    return pl.pallas_call(
        kernel,
        out_shape=jax.ShapeDtypeStruct((B, H, N, N), out_dtype),
        grid_spec=pltpu.PrefetchScalarGridSpec(
            num_scalar_prefetch=0,
            grid=(B, HG),
            in_specs=[
                pl.BlockSpec((1, N, Din), lambda b, hg: (b, 0, 0)),   # x
                pl.BlockSpec((1, Din, W), lambda b, hg: (hg, 0, 0)),  # fused W
                pl.BlockSpec((1, 1, W), lambda b, hg: (hg, 0, 0)),    # fused b
                pl.BlockSpec((N, W // 2), lambda b, hg: (0, 0)),      # cos (resident)
                pl.BlockSpec((N, W // 2), lambda b, hg: (0, 0)),      # sin (resident)
                pl.BlockSpec((1, N, 1), lambda b, hg: (b, 0, 0)),     # mask_q
                pl.BlockSpec((1, 1, N), lambda b, hg: (b, 0, 0)),     # mask_k
            ],
            out_specs=pl.BlockSpec((1, G, N, N), lambda b, hg: (b, hg, 0, 0)),
            scratch_shapes=[pltpu.VMEM((N, N), jnp.float32)],         # mask bias
        ),
        compiler_params=pltpu.CompilerParams(**cp_kwargs),
    )(x_c, wf, bf, cos_t, sin_t, mq, mk)


def _reference(x, weight, bias, mask, H, Dh, compute_dtype=jnp.float32):
    """Pure-JAX transcription of the PyTorch/TF forward (for verification)."""
    B, N, _ = x.shape
    proj = jnp.dot(x.astype(compute_dtype), weight.astype(compute_dtype),
                   preferred_element_type=jnp.float32) + bias.astype(jnp.float32)
    proj = proj.reshape(B, N, H, 2 * Dh)
    qw, kw = proj[..., :Dh], proj[..., Dh:]

    pos = jnp.arange(N, dtype=jnp.float32)
    idx = jnp.arange(Dh // 2, dtype=jnp.float32)
    inv_freq = jnp.power(10000.0, -2.0 * idx / Dh)
    ang = pos[:, None] * inv_freq[None, :]
    cos_pos = jnp.repeat(jnp.cos(ang), 2, -1)[None, :, None, :]
    sin_pos = jnp.repeat(jnp.sin(ang), 2, -1)[None, :, None, :]

    def rope(t):
        t2 = jnp.stack([-t[..., 1::2], t[..., ::2]], axis=-1).reshape(t.shape)
        return t * cos_pos + t2 * sin_pos

    qr = rope(qw).astype(compute_dtype)
    kr = rope(kw).astype(compute_dtype)
    logits = jnp.einsum('bmhd,bnhd->bhmn', qr, kr,
                        preferred_element_type=jnp.float32)
    m = mask.astype(jnp.float32)
    logits = jnp.where(m[:, None, :, None] > 0, logits, -jnp.inf)
    logits = jnp.where(m[:, None, None, :] > 0, logits, -jnp.inf)
    tri = jnp.triu(jnp.ones((N, N), jnp.float32))
    logits = logits - (1.0 - tri) * 1e12
    return logits / math.sqrt(Dh)


if __name__ == "__main__":
    B, N, Din = 2, 8, 32
    H, Dh = 4, 16

    key = jax.random.PRNGKey(0)
    kx, kw_, kb = jax.random.split(key, 3)
    x = jax.random.normal(kx, (B, N, Din), dtype=jnp.float32)
    weight = jax.random.normal(kw_, (Din, H * 2 * Dh), dtype=jnp.float32) * 0.05
    bias = jax.random.normal(kb, (H * 2 * Dh,), dtype=jnp.float32) * 0.01
    # sequence mask: batch 0 full length, batch 1 has 2 padded positions
    mask = jnp.array([[1.0] * N, [1.0] * (N - 2) + [0.0, 0.0]], dtype=jnp.float32)

    # Full-precision path: tight check against the pure-JAX reference.
    out_f32 = global_pointer(x, weight, bias, mask, head_num=H, head_size=Dh,
                             compute_dtype=jnp.float32)
    out_f32 = jax.block_until_ready(out_f32)
    assert out_f32.shape == (B, H, N, N)
    ref_f32 = _reference(x, weight, bias, mask, H, Dh, compute_dtype=jnp.float32)
    np.testing.assert_allclose(np.asarray(out_f32), np.asarray(ref_f32),
                               rtol=1e-4, atol=1e-4)

    # Default fast path (bf16 MXU inputs, f32 accumulation): looser check.
    out_bf16 = jax.block_until_ready(
        global_pointer(x, weight, bias, mask, head_num=H, head_size=Dh))
    ref_bf16 = _reference(x, weight, bias, mask, H, Dh,
                          compute_dtype=jnp.bfloat16)
    np.testing.assert_allclose(np.asarray(out_bf16), np.asarray(ref_bf16),
                               rtol=2e-2, atol=1e-2)

    print("KERNEL_OK")
</pallas_src>

<mosaic_0001>
module attributes {stable_mosaic.version = 11 : i64} {
  func.func @_gp_kernel(%arg0: i32, %arg1: i32, %arg2: memref<1x8x32xf32, #tpu.memory_space<vmem>>, %arg3: memref<1x32x128xf32, #tpu.memory_space<vmem>>, %arg4: memref<1x1x128xf32, #tpu.memory_space<vmem>>, %arg5: memref<8x64xf32, #tpu.memory_space<vmem>>, %arg6: memref<8x64xf32, #tpu.memory_space<vmem>>, %arg7: memref<1x8x1xf32, #tpu.memory_space<vmem>>, %arg8: memref<1x1x8xf32, #tpu.memory_space<vmem>>, %arg9: memref<1x4x8x8xf32, #tpu.memory_space<vmem>>, %arg10: memref<8x8xf32, #tpu.memory_space<vmem>>) attributes {dimension_semantics = [#tpu.dimension_semantics<parallel>, #tpu.dimension_semantics<arbitrary>], iteration_bounds = array<i64: 2, 1>, scalar_prefetch = 0 : i64, scratch_operands = 1 : i64, tpu.core_type = #tpu.core_type<tc>, window_params = [{transform_indices = @transform_0, window_bounds = array<i64: 1, 8, 32>}, {transform_indices = @transform_1, window_bounds = array<i64: 1, 32, 128>}, {transform_indices = @transform_2, window_bounds = array<i64: 1, 1, 128>}, {pipeline_mode = #tpu.pipeline_mode<synchronous>, transform_indices = @transform_3, window_bounds = array<i64: 8, 64>}, {pipeline_mode = #tpu.pipeline_mode<synchronous>, transform_indices = @transform_4, window_bounds = array<i64: 8, 64>}, {transform_indices = @transform_5, window_bounds = array<i64: 1, 8, 1>}, {transform_indices = @transform_6, window_bounds = array<i64: 1, 1, 8>}, {transform_indices = @transform_7, window_bounds = array<i64: 1, 4, 8, 8>}]} {
    %c0_i32 = arith.constant 0 : i32
    %0 = arith.cmpi eq, %arg1, %c0_i32 : i32
    %1 = arith.extui %0 : i1 to i32
    %c0_i32_0 = arith.constant 0 : i32
    %2 = arith.cmpi ne, %1, %c0_i32_0 : i32
    scf.if %2 {
      %67 = tpu.iota {dimensions = array<i32: 0>} : vector<8x8xi32>
      %68 = tpu.iota {dimensions = array<i32: 1>} : vector<8x8xi32>
      %69 = arith.cmpi sgt, %67, %68 : vector<8x8xi32>
      %cst_36 = arith.constant -2.500000e+11 : f32
      %cst_37 = arith.constant 0.000000e+00 : f32
      %70 = vector.broadcast %cst_36 : f32 to vector<8x8xf32>
      %71 = vector.broadcast %cst_37 : f32 to vector<8x8xf32>
      %72 = arith.select %69, %70, %71 : vector<8x8xi1>, vector<8x8xf32>
      %c0_38 = arith.constant 0 : index
      %c0_39 = arith.constant 0 : index
      %c0_40 = arith.constant 0 : index
      %73 = vector.load %arg7[%c0_38, %c0_39, %c0_40] : memref<1x8x1xf32, #tpu.memory_space<vmem>>, vector<1x8x1xf32>
      %74 = vector.shape_cast %73 : vector<1x8x1xf32> to vector<8x1xf32>
      %c0_41 = arith.constant 0 : index
      %c0_42 = arith.constant 0 : index
      %c0_43 = arith.constant 0 : index
      %75 = vector.load %arg8[%c0_41, %c0_42, %c0_43] : memref<1x1x8xf32, #tpu.memory_space<vmem>>, vector<1x1x8xf32>
      %76 = vector.shape_cast %75 : vector<1x1x8xf32> to vector<1x8xf32>
      %77 = vector.broadcast %74 : vector<8x1xf32> to vector<8x8xf32>
      %78 = vector.broadcast %76 : vector<1x8xf32> to vector<8x8xf32>
      %79 = arith.mulf %77, %78 : vector<8x8xf32>
      %cst_44 = arith.constant 0.000000e+00 : f32
      %80 = vector.broadcast %cst_44 : f32 to vector<8x8xf32>
      %81 = arith.cmpf ogt, %79, %80 : vector<8x8xf32>
      %cst_45 = arith.constant 0xFF800000 : f32
      %82 = vector.broadcast %cst_45 : f32 to vector<8x8xf32>
      %83 = arith.select %81, %72, %82 : vector<8x8xi1>, vector<8x8xf32>
      %c0_46 = arith.constant 0 : index
      %c0_47 = arith.constant 0 : index
      %84 = vector.load %arg10[%c0_46, %c0_47] : memref<8x8xf32, #tpu.memory_space<vmem>>, vector<8x8xf32>
      tpu.vector_store %arg10[%c0_46, %c0_47], %83 {strides = array<i32>} : memref<8x8xf32, #tpu.memory_space<vmem>>, vector<8x8xf32>,
    } else {
    }
    %c0 = arith.constant 0 : index
    %c0_1 = arith.constant 0 : index
    %c0_2 = arith.constant 0 : index
    %3 = vector.load %arg2[%c0, %c0_1, %c0_2] : memref<1x8x32xf32, #tpu.memory_space<vmem>>, vector<1x8x32xf32>
    %4 = vector.shape_cast %3 : vector<1x8x32xf32> to vector<8x32xf32>
    %c0_3 = arith.constant 0 : index
    %c0_4 = arith.constant 0 : index
    %c0_5 = arith.constant 0 : index
    %5 = vector.load %arg3[%c0_3, %c0_4, %c0_5] : memref<1x32x128xf32, #tpu.memory_space<vmem>>, vector<1x32x128xf32>
    %6 = vector.shape_cast %5 : vector<1x32x128xf32> to vector<32x128xf32>
    %cst = arith.constant dense<0.000000e+00> : vector<8x128xf32>
    %7 = tpu.matmul %4, %6, %cst {dimension_numbers = #tpu.dot_dimension_numbers<[1], [0], [0], [1], [0, 0, 1, 1], [], []>} : vector<8x32xf32>, vector<32x128xf32>, vector<8x128xf32> -> vector<8x128xf32>
    %c0_6 = arith.constant 0 : index
    %c0_7 = arith.constant 0 : index
    %c0_8 = arith.constant 0 : index
    %8 = vector.load %arg4[%c0_6, %c0_7, %c0_8] : memref<1x1x128xf32, #tpu.memory_space<vmem>>, vector<1x1x128xf32>
    %9 = vector.shape_cast %8 : vector<1x1x128xf32> to vector<1x128xf32>
    %10 = vector.broadcast %9 : vector<1x128xf32> to vector<8x128xf32>
    %11 = arith.addf %7, %10 : vector<8x128xf32>
    %12 = vector.extract_strided_slice %11 {offsets = [0, 0], sizes = [8, 64], strides = [1, 1]} : vector<8x128xf32> to vector<8x64xf32>
    %13 = vector.extract_strided_slice %11 {offsets = [0, 64], sizes = [8, 64], strides = [1, 1]} : vector<8x128xf32> to vector<8x64xf32>
    %c0_9 = arith.constant 0 : index
    %c0_10 = arith.constant 0 : index
    %14 = vector.load %arg5[%c0_9, %c0_10] : memref<8x64xf32, #tpu.memory_space<vmem>>, vector<8x64xf32>
    %c0_11 = arith.constant 0 : index
    %c0_12 = arith.constant 0 : index
    %15 = vector.load %arg6[%c0_11, %c0_12] : memref<8x64xf32, #tpu.memory_space<vmem>>, vector<8x64xf32>
    %16 = arith.mulf %12, %14 : vector<8x64xf32>
    %17 = arith.mulf %13, %15 : vector<8x64xf32>
    %18 = arith.subf %16, %17 : vector<8x64xf32>
    %19 = arith.mulf %13, %14 : vector<8x64xf32>
    %20 = arith.mulf %12, %15 : vector<8x64xf32>
    %21 = arith.addf %19, %20 : vector<8x64xf32>
    %c0_13 = arith.constant 0 : index
    %c0_14 = arith.constant 0 : index
    %22 = vector.load %arg10[%c0_13, %c0_14] : memref<8x8xf32, #tpu.memory_space<vmem>>, vector<8x8xf32>
    %23 = vector.extract_strided_slice %18 {offsets = [0, 0], sizes = [8, 8], strides = [1, 1]} : vector<8x64xf32> to vector<8x8xf32>
    %24 = vector.extract_strided_slice %18 {offsets = [0, 8], sizes = [8, 8], strides = [1, 1]} : vector<8x64xf32> to vector<8x8xf32>
    %cst_15 = arith.constant dense<0.000000e+00> : vector<8x8xf32>
    %25 = tpu.matmul %23, %24, %cst_15 {dimension_numbers = #tpu.dot_dimension_numbers<[1], [1], [0], [0], [0, 0, 1, 0], [], []>} : vector<8x8xf32>, vector<8x8xf32>, vector<8x8xf32> -> vector<8x8xf32>
    %26 = vector.extract_strided_slice %21 {offsets = [0, 0], sizes = [8, 8], strides = [1, 1]} : vector<8x64xf32> to vector<8x8xf32>
    %27 = vector.extract_strided_slice %21 {offsets = [0, 8], sizes = [8, 8], strides = [1, 1]} : vector<8x64xf32> to vector<8x8xf32>
    %cst_16 = arith.constant dense<0.000000e+00> : vector<8x8xf32>
    %28 = tpu.matmul %26, %27, %cst_16 {dimension_numbers = #tpu.dot_dimension_numbers<[1], [1], [0], [0], [0, 0, 1, 0], [], []>} : vector<8x8xf32>, vector<8x8xf32>, vector<8x8xf32> -> vector<8x8xf32>
    %29 = arith.addf %25, %28 : vector<8x8xf32>
    %30 = arith.addf %29, %22 : vector<8x8xf32>
    %c0_17 = arith.constant 0 : index
    %c0_18 = arith.constant 0 : index
    %c0_19 = arith.constant 0 : index
    %c0_20 = arith.constant 0 : index
    %31 = vector.load %arg9[%c0_17, %c0_18, %c0_19, %c0_20] : memref<1x4x8x8xf32, #tpu.memory_space<vmem>>, vector<1x1x8x8xf32>
    %32 = vector.shape_cast %31 : vector<1x1x8x8xf32> to vector<8x8xf32>
    %33 = vector.shape_cast %30 : vector<8x8xf32> to vector<1x1x8x8xf32>
    tpu.vector_store %arg9[%c0_17, %c0_18, %c0_19, %c0_20], %33 {strides = array<i32>} : memref<1x4x8x8xf32, #tpu.memory_space<vmem>>, vector<1x1x8x8xf32>,
    %34 = vector.extract_strided_slice %18 {offsets = [0, 16], sizes = [8, 8], strides = [1, 1]} : vector<8x64xf32> to vector<8x8xf32>
    %35 = vector.extract_strided_slice %18 {offsets = [0, 24], sizes = [8, 8], strides = [1, 1]} : vector<8x64xf32> to vector<8x8xf32>
    %cst_21 = arith.constant dense<0.000000e+00> : vector<8x8xf32>
    %36 = tpu.matmul %34, %35, %cst_21 {dimension_numbers = #tpu.dot_dimension_numbers<[1], [1], [0], [0], [0, 0, 1, 0], [], []>} : vector<8x8xf32>, vector<8x8xf32>, vector<8x8xf32> -> vector<8x8xf32>
    %37 = vector.extract_strided_slice %21 {offsets = [0, 16], sizes = [8, 8], strides = [1, 1]} : vector<8x64xf32> to vector<8x8xf32>
    %38 = vector.extract_strided_slice %21 {offsets = [0, 24], sizes = [8, 8], strides = [1, 1]} : vector<8x64xf32> to vector<8x8xf32>
    %cst_22 = arith.constant dense<0.000000e+00> : vector<8x8xf32>
    %39 = tpu.matmul %37, %38, %cst_22 {dimension_numbers = #tpu.dot_dimension_numbers<[1], [1], [0], [0], [0, 0, 1, 0], [], []>} : vector<8x8xf32>, vector<8x8xf32>, vector<8x8xf32> -> vector<8x8xf32>
    %40 = arith.addf %36, %39 : vector<8x8xf32>
    %41 = arith.addf %40, %22 : vector<8x8xf32>
    %c0_23 = arith.constant 0 : index
    %c1 = arith.constant 1 : index
    %c0_24 = arith.constant 0 : index
    %c0_25 = arith.constant 0 : index
    %42 = vector.load %arg9[%c0_23, %c1, %c0_24, %c0_25] : memref<1x4x8x8xf32, #tpu.memory_space<vmem>>, vector<1x1x8x8xf32>
    %43 = vector.shape_cast %42 : vector<1x1x8x8xf32> to vector<8x8xf32>
    %44 = vector.shape_cast %41 : vector<8x8xf32> to vector<1x1x8x8xf32>
    tpu.vector_store %arg9[%c0_23, %c1, %c0_24, %c0_25], %44 {strides = array<i32>} : memref<1x4x8x8xf32, #tpu.memory_space<vmem>>, vector<1x1x8x8xf32>,
    %45 = vector.extract_strided_slice %18 {offsets = [0, 32], sizes = [8, 8], strides = [1, 1]} : vector<8x64xf32> to vector<8x8xf32>
    %46 = vector.extract_strided_slice %18 {offsets = [0, 40], sizes = [8, 8], strides = [1, 1]} : vector<8x64xf32> to vector<8x8xf32>
    %cst_26 = arith.constant dense<0.000000e+00> : vector<8x8xf32>
    %47 = tpu.matmul %45, %46, %cst_26 {dimension_numbers = #tpu.dot_dimension_numbers<[1], [1], [0], [0], [0, 0, 1, 0], [], []>} : vector<8x8xf32>, vector<8x8xf32>, vector<8x8xf32> -> vector<8x8xf32>
    %48 = vector.extract_strided_slice %21 {offsets = [0, 32], sizes = [8, 8], strides = [1, 1]} : vector<8x64xf32> to vector<8x8xf32>
    %49 = vector.extract_strided_slice %21 {offsets = [0, 40], sizes = [8, 8], strides = [1, 1]} : vector<8x64xf32> to vector<8x8xf32>
    %cst_27 = arith.constant dense<0.000000e+00> : vector<8x8xf32>
    %50 = tpu.matmul %48, %49, %cst_27 {dimension_numbers = #tpu.dot_dimension_numbers<[1], [1], [0], [0], [0, 0, 1, 0], [], []>} : vector<8x8xf32>, vector<8x8xf32>, vector<8x8xf32> -> vector<8x8xf32>
    %51 = arith.addf %47, %50 : vector<8x8xf32>
    %52 = arith.addf %51, %22 : vector<8x8xf32>
    %c0_28 = arith.constant 0 : index
    %c2 = arith.constant 2 : index
    %c0_29 = arith.constant 0 : index
    %c0_30 = arith.constant 0 : index
    %53 = vector.load %arg9[%c0_28, %c2, %c0_29, %c0_30] : memref<1x4x8x8xf32, #tpu.memory_space<vmem>>, vector<1x1x8x8xf32>
    %54 = vector.shape_cast %53 : vector<1x1x8x8xf32> to vector<8x8xf32>
    %55 = vector.shape_cast %52 : vector<8x8xf32> to vector<1x1x8x8xf32>
    tpu.vector_store %arg9[%c0_28, %c2, %c0_29, %c0_30], %55 {strides = array<i32>} : memref<1x4x8x8xf32, #tpu.memory_space<vmem>>, vector<1x1x8x8xf32>,
    %56 = vector.extract_strided_slice %18 {offsets = [0, 48], sizes = [8, 8], strides = [1, 1]} : vector<8x64xf32> to vector<8x8xf32>
    %57 = vector.extract_strided_slice %18 {offsets = [0, 56], sizes = [8, 8], strides = [1, 1]} : vector<8x64xf32> to vector<8x8xf32>
    %cst_31 = arith.constant dense<0.000000e+00> : vector<8x8xf32>
    %58 = tpu.matmul %56, %57, %cst_31 {dimension_numbers = #tpu.dot_dimension_numbers<[1], [1], [0], [0], [0, 0, 1, 0], [], []>} : vector<8x8xf32>, vector<8x8xf32>, vector<8x8xf32> -> vector<8x8xf32>
    %59 = vector.extract_strided_slice %21 {offsets = [0, 48], sizes = [8, 8], strides = [1, 1]} : vector<8x64xf32> to vector<8x8xf32>
    %60 = vector.extract_strided_slice %21 {offsets = [0, 56], sizes = [8, 8], strides = [1, 1]} : vector<8x64xf32> to vector<8x8xf32>
    %cst_32 = arith.constant dense<0.000000e+00> : vector<8x8xf32>
    %61 = tpu.matmul %59, %60, %cst_32 {dimension_numbers = #tpu.dot_dimension_numbers<[1], [1], [0], [0], [0, 0, 1, 0], [], []>} : vector<8x8xf32>, vector<8x8xf32>, vector<8x8xf32> -> vector<8x8xf32>
    %62 = arith.addf %58, %61 : vector<8x8xf32>
    %63 = arith.addf %62, %22 : vector<8x8xf32>
    %c0_33 = arith.constant 0 : index
    %c3 = arith.constant 3 : index
    %c0_34 = arith.constant 0 : index
    %c0_35 = arith.constant 0 : index
    %64 = vector.load %arg9[%c0_33, %c3, %c0_34, %c0_35] : memref<1x4x8x8xf32, #tpu.memory_space<vmem>>, vector<1x1x8x8xf32>
    %65 = vector.shape_cast %64 : vector<1x1x8x8xf32> to vector<8x8xf32>
    %66 = vector.shape_cast %63 : vector<8x8xf32> to vector<1x1x8x8xf32>
    tpu.vector_store %arg9[%c0_33, %c3, %c0_34, %c0_35], %66 {strides = array<i32>} : memref<1x4x8x8xf32, #tpu.memory_space<vmem>>, vector<1x1x8x8xf32>,
    return
  }
  func.func @transform_0(%arg0: i32, %arg1: i32) -> (i32, i32, i32) {
    %c0_i32 = arith.constant 0 : i32
    %c0_i32_0 = arith.constant 0 : i32
    %c0_i32_1 = arith.constant 0 : i32
    return %arg0, %c0_i32, %c0_i32_0 : i32, i32, i32
  }
  func.func @transform_1(%arg0: i32, %arg1: i32) -> (i32, i32, i32) {
    %c0_i32 = arith.constant 0 : i32
    %c0_i32_0 = arith.constant 0 : i32
    %c0_i32_1 = arith.constant 0 : i32
    return %arg1, %c0_i32, %c0_i32_0 : i32, i32, i32
  }
  func.func @transform_2(%arg0: i32, %arg1: i32) -> (i32, i32, i32) {
    %c0_i32 = arith.constant 0 : i32
    %c0_i32_0 = arith.constant 0 : i32
    %c0_i32_1 = arith.constant 0 : i32
    return %arg1, %c0_i32, %c0_i32_0 : i32, i32, i32
  }
  func.func @transform_3(%arg0: i32, %arg1: i32) -> (i32, i32) {
    %c0_i32 = arith.constant 0 : i32
    %c0_i32_0 = arith.constant 0 : i32
    %c0_i32_1 = arith.constant 0 : i32
    return %c0_i32, %c0_i32_0 : i32, i32
  }
  func.func @transform_4(%arg0: i32, %arg1: i32) -> (i32, i32) {
    %c0_i32 = arith.constant 0 : i32
    %c0_i32_0 = arith.constant 0 : i32
    %c0_i32_1 = arith.constant 0 : i32
    return %c0_i32, %c0_i32_0 : i32, i32
  }
  func.func @transform_5(%arg0: i32, %arg1: i32) -> (i32, i32, i32) {
    %c0_i32 = arith.constant 0 : i32
    %c0_i32_0 = arith.constant 0 : i32
    %c0_i32_1 = arith.constant 0 : i32
    return %arg0, %c0_i32, %c0_i32_0 : i32, i32, i32
  }
  func.func @transform_6(%arg0: i32, %arg1: i32) -> (i32, i32, i32) {
    %c0_i32 = arith.constant 0 : i32
    %c0_i32_0 = arith.constant 0 : i32
    %c0_i32_1 = arith.constant 0 : i32
    return %arg0, %c0_i32, %c0_i32_0 : i32, i32, i32
  }
  func.func @transform_7(%arg0: i32, %arg1: i32) -> (i32, i32, i32, i32) {
    %c0_i32 = arith.constant 0 : i32
    %c0_i32_0 = arith.constant 0 : i32
    %c0_i32_1 = arith.constant 0 : i32
    return %arg0, %arg1, %c0_i32, %c0_i32_0 : i32, i32, i32, i32
  }
}

</mosaic_0001>

<llo_original>
// kernel: tpu_custom_call.1
$region0: #{tpu_custom_call.1}
  #allocation0 [shape = 'u32[]', space=smem, size = 0x4, offset = 0x4, fixed_abs, tag = 'smem constant byte address 0x4 - core index']
  #allocation1 [shape = 'u32[144,128]{1,0:T(1,128)}', space=vmem, size = 0x12000, scoped, tag = 'internal scratch']
  #allocation2 [shape = 'f32[8,8]{1,0:T(8,128)}', space=vmem, size = 0x1000, scoped, tag = 'scratch operand']
  %s0 = inlined_call_operand.vmem [shape: f32[2,8,32], index: 0, kind: input, shape index: {}]
  %s1 = inlined_call_operand.hbm [shape: f32[1,32,128], index: 1, kind: input, shape index: {}]
  %s2 = inlined_call_operand.hbm [shape: f32[1,1,128], index: 2, kind: input, shape index: {}]
  %s3 = inlined_call_operand.vmem [shape: f32[8,64], index: 3, kind: input, shape index: {}]
  %s4 = inlined_call_operand.vmem [shape: f32[8,64], index: 4, kind: input, shape index: {}]
  %s5 = inlined_call_operand.vmem [shape: f32[2,8,1], index: 5, kind: input, shape index: {}]
  %s6 = inlined_call_operand.vmem [shape: f32[2,1,8], index: 6, kind: input, shape index: {}]
  %s7 = inlined_call_operand.hbm [shape: f32[2,4,8,8], index: 7, kind: output, shape index: {}]
  %s8 = sld [smem:[#allocation0]]
  $region73: #{tpu_custom_call.1} parent=0
    _
  %s10 = ssub.s32 1, %s8
  %s11 = scalar_select 0, %s10, %s8
  $region1: #{tpu_custom_call.1} parent=0
    #allocation3 [shape = 'u8[16384]{0}', space=vmem, size = 0x4000, scoped, tag = 'input window, operand 1, single buffered']
    #allocation4 [shape = 's32[2]{0}', space=sflag, size = 0x8, scoped, tag = 'scoped memory for tpu_custom_call.1']
    #allocation5 [shape = 's32[2]{0}', space=sflag, size = 0x8, scoped, tag = 'scoped memory for tpu_custom_call.1']
    #allocation6 [shape = 'u8[512]{0}', space=vmem, size = 0x400, scoped, tag = 'input window, operand 2, single buffered']
    #allocation7 [shape = 's32[1]{0}', space=sflag, size = 0x4, scoped, tag = 'scoped memory for tpu_custom_call.1']
    #allocation8 [shape = 'u8[32768]{0}', space=vmem, size = 0x8000, scoped, tag = 'output window, operand 0']
    %12 = vsyncpa [#allocation4], 0
    %13 = vsyncpa [#allocation7], 0
    %14 = vsyncpa [#allocation5], 0
    %s15 = scalar_lea.sflag [#allocation5], 1
    %16 = vsyncpa %s15, 0
    loop: start=0, step=1, limit=4
    $region2: #{tpu_custom_call.1} parent=1 // loop_pre_header
      _
    $region3: #{tpu_custom_call.1} parent=1 // loop_header
      %s18 = sphi 0, %s22
      %p19 = scmp.ge.s32.totalorder %s18, 4
      %s25 = sphi 0, %s37
      %s26 = sphi 0, %s33
      %s27 = sphi 0, %s25
      %s28 = sphi 0, %s26
      %s29 = sphi 0, %s27
      %s30 = sphi 0, %s28
      %s40 = sphi 0, %s42
      %s43 = sphi 0, %s40
      %s44 = sphi 0, %s43
      %s60 = sphi 0, %s44
      %s66 = sphi 0, %s68
      %s69 = sphi 0, %s66
      %s70 = sphi 0, %s69
      %s86 = sphi 0, %s70
      %s92 = sphi 0, %s94
      %s95 = sphi 0, %s92
      %s96 = sphi 0, %s95
      %s112 = sphi 0, %s96
      %s116 = sphi 0, %s116
      %s118 = sphi 0, %s116
      %s119 = sphi 0, %s118
      %s133 = sphi 0, %s119
      %s137 = sphi 0, %s137
      %s139 = sphi 0, %s137
      %s140 = sphi 0, %s139
      %s154 = sphi 0, %s140
      %s160 = sphi 0, %s162
      %s163 = sphi 0, %s160
      %s164 = sphi 0, %s163
      %s180 = sphi 0, %s164
      %s186 = sphi 0, %s188
      %s189 = sphi 0, %s186
      %s190 = sphi 0, %s189
      %s206 = sphi 0, %s190
      %s214 = sphi 0, %s216
      %s217 = sphi 0, %s214
      %s218 = sphi 0, %s217
      %s234 = sphi 0, %s218
    $region4: #{tpu_custom_call.1} parent=1 // loop_header_branch
      %21 = sbr.rel (%p19) target = $region8
    $region5: #{tpu_custom_call.1} parent=1 // loop_body
      %s23 = ssub.s32 %s18, 1
      %s24 = ssub.s32 %s18, 2
      %s31 = sadd.s32 1, %s26
      %p32 = scmp.ge.s32.totalorder %s31, 1
      %s33 = scalar_select %p32, 0, %s31
      %s34 = sadd.s32 1, %s25
      %s35 = scalar_select %p32, %s34, %s25
      %p36 = scmp.ge.s32.totalorder %s35, 2
      %s37 = scalar_select %p36, 0, %s35
      %s38 = ssub.s32 %s25, %s37
      %p39 = scmp.eq.s32.totalorder %s38, 0
      %s41 = sadd.s32 %s40, 1
      %s42 = scalar_select %p39, %s40, %s41
      %p45 = pneg %p39
      %p46 = scmp.eq.s32.totalorder %s18, 1
      %p47 = por %p45, %p46
      %p48 = scmp.ne.s32.totalorder %s40, %s43
      %p49 = scmp.eq.s32.totalorder %s18, 0
      %p50 = por %p48, %p49
      %p51 = scmp.ne.s32.totalorder %s40, %s43
      %p52 = scmp.eq.s32.totalorder %s23, 1
      %p53 = por %p51, %p52
      %p54 = scmp.ne.s32.totalorder %s43, %s44
      %p55 = scmp.eq.s32.totalorder %s23, 0
      %p56 = por %p54, %p55
      %p57 = scmp.ne.s32.totalorder %s43, %s44
      %p58 = scmp.eq.s32.totalorder %s24, 1
      %p59 = por %p57, %p58
      %p61 = scmp.ne.s32.totalorder %s44, %s60
      %p62 = scmp.eq.s32.totalorder %s24, 0
      %p63 = por %p61, %p62
      %s64 = ssub.s32 %s26, %s33
      %p65 = scmp.eq.s32.totalorder %s64, 0
      %s67 = sadd.s32 %s66, 1
      %s68 = scalar_select %p65, %s66, %s67
      %p71 = pneg %p65
      %p72 = scmp.eq.s32.totalorder %s18, 1
      %p73 = por %p71, %p72
      %p74 = scmp.ne.s32.totalorder %s66, %s69
      %p75 = scmp.eq.s32.totalorder %s18, 0
      %p76 = por %p74, %p75
      %p77 = scmp.ne.s32.totalorder %s66, %s69
      %p78 = scmp.eq.s32.totalorder %s23, 1
      %p79 = por %p77, %p78
      %p80 = scmp.ne.s32.totalorder %s69, %s70
      %p81 = scmp.eq.s32.totalorder %s23, 0
      %p82 = por %p80, %p81
      %p83 = scmp.ne.s32.totalorder %s69, %s70
      %p84 = scmp.eq.s32.totalorder %s24, 1
      %p85 = por %p83, %p84
      %p87 = scmp.ne.s32.totalorder %s70, %s86
      %p88 = scmp.eq.s32.totalorder %s24, 0
      %p89 = por %p87, %p88
      %s90 = ssub.s32 %s26, %s33
      %p91 = scmp.eq.s32.totalorder %s90, 0
      %s93 = sadd.s32 %s92, 1
      %s94 = scalar_select %p91, %s92, %s93
      %p97 = pneg %p91
      %p98 = scmp.eq.s32.totalorder %s18, 1
      %p99 = por %p97, %p98
      %p100 = scmp.ne.s32.totalorder %s92, %s95
      %p101 = scmp.eq.s32.totalorder %s18, 0
      %p102 = por %p100, %p101
      %p103 = scmp.ne.s32.totalorder %s92, %s95
      %p104 = scmp.eq.s32.totalorder %s23, 1
      %p105 = por %p103, %p104
      %p106 = scmp.ne.s32.totalorder %s95, %s96
      %p107 = scmp.eq.s32.totalorder %s23, 0
      %p108 = por %p106, %p107
      %p109 = scmp.ne.s32.totalorder %s95, %s96
      %p110 = scmp.eq.s32.totalorder %s24, 1
      %p111 = por %p109, %p110
      %p113 = scmp.ne.s32.totalorder %s96, %s112
      %p114 = scmp.eq.s32.totalorder %s24, 0
      %p115 = por %p113, %p114
      %s117 = sadd.s32 %s116, 1
      %p120 = scmp.eq.s32.totalorder %s18, 1
      %p121 = scmp.ne.s32.totalorder %s116, %s118
      %p122 = scmp.eq.s32.totalorder %s18, 0
      %p123 = por %p121, %p122
      %p124 = scmp.ne.s32.totalorder %s116, %s118
      %p125 = scmp.eq.s32.totalorder %s23, 1
      %p126 = por %p124, %p125
      %p127 = scmp.ne.s32.totalorder %s118, %s119
      %p128 = scmp.eq.s32.totalorder %s23, 0
      %p129 = por %p127, %p128
      %p130 = scmp.ne.s32.totalorder %s118, %s119
      %p131 = scmp.eq.s32.totalorder %s24, 1
      %p132 = por %p130, %p131
      %p134 = scmp.ne.s32.totalorder %s119, %s133
      %p135 = scmp.eq.s32.totalorder %s24, 0
      %p136 = por %p134, %p135
      %s138 = sadd.s32 %s137, 1
      %p141 = scmp.eq.s32.totalorder %s18, 1
      %p142 = scmp.ne.s32.totalorder %s137, %s139
      %p143 = scmp.eq.s32.totalorder %s18, 0
      %p144 = por %p142, %p143
      %p145 = scmp.ne.s32.totalorder %s137, %s139
      %p146 = scmp.eq.s32.totalorder %s23, 1
      %p147 = por %p145, %p146
      %p148 = scmp.ne.s32.totalorder %s139, %s140
      %p149 = scmp.eq.s32.totalorder %s23, 0
      %p150 = por %p148, %p149
      %p151 = scmp.ne.s32.totalorder %s139, %s140
      %p152 = scmp.eq.s32.totalorder %s24, 1
      %p153 = por %p151, %p152
      %p155 = scmp.ne.s32.totalorder %s140, %s154
      %p156 = scmp.eq.s32.totalorder %s24, 0
      %p157 = por %p155, %p156
      %s158 = ssub.s32 %s25, %s37
      %p159 = scmp.eq.s32.totalorder %s158, 0
      %s161 = sadd.s32 %s160, 1
      %s162 = scalar_select %p159, %s160, %s161
      %p165 = pneg %p159
      %p166 = scmp.eq.s32.totalorder %s18, 1
      %p167 = por %p165, %p166
      %p168 = scmp.ne.s32.totalorder %s160, %s163
      %p169 = scmp.eq.s32.totalorder %s18, 0
      %p170 = por %p168, %p169
      %p171 = scmp.ne.s32.totalorder %s160, %s163
      %p172 = scmp.eq.s32.totalorder %s23, 1
      %p173 = por %p171, %p172
      %p174 = scmp.ne.s32.totalorder %s163, %s164
      %p175 = scmp.eq.s32.totalorder %s23, 0
      %p176 = por %p174, %p175
      %p177 = scmp.ne.s32.totalorder %s163, %s164
      %p178 = scmp.eq.s32.totalorder %s24, 1
      %p179 = por %p177, %p178
      %p181 = scmp.ne.s32.totalorder %s164, %s180
      %p182 = scmp.eq.s32.totalorder %s24, 0
      %p183 = por %p181, %p182
      %s184 = ssub.s32 %s25, %s37
      %p185 = scmp.eq.s32.totalorder %s184, 0
      %s187 = sadd.s32 %s186, 1
      %s188 = scalar_select %p185, %s186, %s187
      %p191 = pneg %p185
      %p192 = scmp.eq.s32.totalorder %s18, 1
      %p193 = por %p191, %p192
      %p194 = scmp.ne.s32.totalorder %s186, %s189
      %p195 = scmp.eq.s32.totalorder %s18, 0
      %p196 = por %p194, %p195
      %p197 = scmp.ne.s32.totalorder %s186, %s189
      %p198 = scmp.eq.s32.totalorder %s23, 1
      %p199 = por %p197, %p198
      %p200 = scmp.ne.s32.totalorder %s189, %s190
      %p201 = scmp.eq.s32.totalorder %s23, 0
      %p202 = por %p200, %p201
      %p203 = scmp.ne.s32.totalorder %s189, %s190
      %p204 = scmp.eq.s32.totalorder %s24, 1
      %p205 = por %p203, %p204
      %p207 = scmp.ne.s32.totalorder %s190, %s206
      %p208 = scmp.eq.s32.totalorder %s24, 0
      %p209 = por %p207, %p208
      %s210 = ssub.s32 %s25, %s37
      %s211 = ssub.s32 %s26, %s33
      %s212 = sor.u32 %s210, %s211
      %p213 = scmp.eq.s32.totalorder %s212, 0
      %s215 = sadd.s32 %s214, 1
      %s216 = scalar_select %p213, %s214, %s215
      %p219 = pneg %p213
      %p220 = scmp.eq.s32.totalorder %s18, 1
      %p221 = por %p219, %p220
      %p222 = scmp.ne.s32.totalorder %s214, %s217
      %p223 = scmp.eq.s32.totalorder %s18, 0
      %p224 = por %p222, %p223
      %p225 = scmp.ne.s32.totalorder %s214, %s217
      %p226 = scmp.eq.s32.totalorder %s23, 1
      %p227 = por %p225, %p226
      %p228 = scmp.ne.s32.totalorder %s217, %s218
      %p229 = scmp.eq.s32.totalorder %s23, 0
      %p230 = por %p228, %p229
      %p231 = scmp.ne.s32.totalorder %s217, %s218
      %p232 = scmp.eq.s32.totalorder %s24, 1
      %p233 = por %p231, %p232
      %p235 = scmp.ne.s32.totalorder %s218, %s234
      %p236 = scmp.eq.s32.totalorder %s24, 0
      %p237 = por %p235, %p236
      %p238 = scmp.le.s32.totalorder 1, %s18
      %p239 = scmp.lt.s32.totalorder %s18, 3
      %p240 = pnand %p238, %p239
      %p241 = pneg %p240
      // Predicated region
      $region9: #{tpu_custom_call.1} parent=5 // pred_check
        _
      $region10: #{tpu_custom_call.1} parent=5 // pred_check_branch
        %243 = sbr.rel (%p240) target = $region12
      $region11: #{tpu_custom_call.1} parent=5 // pred_region
        %s244 = ssub.s32 %s18, 1
        // Predicated region
        $region13: #{tpu_custom_call.1} parent=11 // pred_check
          %p245 = pneg %p82
        $region14: #{tpu_custom_call.1} parent=11 // pred_check_branch
          %247 = sbr.rel (%p245) target = $region16
        $region15: #{tpu_custom_call.1} parent=11 // pred_region
          %s249 = ssub.s32 512, 512
          %250 = vsyncadd [#allocation4], %s249
          %s251 = smul.addr %s28, 4
          %s252 = smul.addr %s251, 128
          %s253 = scalar_lea.hbm %s1, %s252
          %s254 = sshll.u32 [#allocation3], 4
          %s255 = int_to_ptr.vmem [resolvable:$true] %s254
          %260 = dma.hbm_to_vmem [thread:$0]  %s253, 512, %s255, [#allocation4], 128, 128, 8
        $region16: #{tpu_custom_call.1} parent=11 // pred_fallthru
          _
        // Predicated region
        $region17: #{tpu_custom_call.1} parent=11 // pred_check
          %p261 = pneg %p108
        $region18: #{tpu_custom_call.1} parent=11 // pred_check_branch
          %263 = sbr.rel (%p261) target = $region20
        $region19: #{tpu_custom_call.1} parent=11 // pred_region
          %s265 = ssub.s32 16, 16
          %266 = vsyncadd [#allocation7], %s265
          %s267 = smul.addr %s28, 16
          %s268 = scalar_lea.hbm %s2, %s267
          %s270 = sshll.u32 [#allocation6], 4
          %s271 = int_to_ptr.vmem [resolvable:$true] %s270
          %273 = dma.hbm_to_vmem [thread:$0]  %s268, 16, %s271, [#allocation7]
        $region20: #{tpu_custom_call.1} parent=11 // pred_fallthru
          _
        // Predicated region
        $region21: #{tpu_custom_call.1} parent=11 // pred_check
          %p274 = pneg %p129
        $region22: #{tpu_custom_call.1} parent=11 // pred_check_branch
          %276 = sbr.rel (%p274) target = $region24
        $region23: #{tpu_custom_call.1} parent=11 // pred_region
          _
        $region24: #{tpu_custom_call.1} parent=11 // pred_fallthru
          _
        // Predicated region
        $region25: #{tpu_custom_call.1} parent=11 // pred_check
          %p277 = pneg %p150
        $region26: #{tpu_custom_call.1} parent=11 // pred_check_branch
          %279 = sbr.rel (%p277) target = $region28
        $region27: #{tpu_custom_call.1} parent=11 // pred_region
          _
        $region28: #{tpu_custom_call.1} parent=11 // pred_fallthru
          _
      $region12: #{tpu_custom_call.1} parent=5 // pred_fallthru
        _
      %p280 = scmp.lt.s32.totalorder %s18, 2
      // Predicated region
      $region29: #{tpu_custom_call.1} parent=5 // pred_check
        %p281 = pneg %p280
      $region30: #{tpu_custom_call.1} parent=5 // pred_check_branch
        %283 = sbr.rel (%p281) target = $region32
      $region31: #{tpu_custom_call.1} parent=5 // pred_region
        // Predicated region
        $region33: #{tpu_custom_call.1} parent=31 // pred_check
          %p284 = pneg %p50
        $region34: #{tpu_custom_call.1} parent=31 // pred_check_branch
          %286 = sbr.rel (%p284) target = $region36
        $region35: #{tpu_custom_call.1} parent=31 // pred_region
          %p287 = scmp.lt.s32.totalorder %s25, 1
          %s288 = scalar_select %p287, %s25, 1
          %s289 = smul.addr %s288, 8
          %s290 = scalar_lea.vmem %s0, %s289
        $region36: #{tpu_custom_call.1} parent=31 // pred_fallthru
          _
        // Predicated region
        $region37: #{tpu_custom_call.1} parent=31 // pred_check
          %p291 = pneg %p170
        $region38: #{tpu_custom_call.1} parent=31 // pred_check_branch
          %293 = sbr.rel (%p291) target = $region40
        $region39: #{tpu_custom_call.1} parent=31 // pred_region
          %p294 = scmp.lt.s32.totalorder %s25, 1
          %s295 = scalar_select %p294, %s25, 1
          %s296 = smul.addr %s295, 8
          %s297 = scalar_lea.vmem %s5, %s296
        $region40: #{tpu_custom_call.1} parent=31 // pred_fallthru
          _
        // Predicated region
        $region41: #{tpu_custom_call.1} parent=31 // pred_check
          %p298 = pneg %p196
        $region42: #{tpu_custom_call.1} parent=31 // pred_check_branch
          %300 = sbr.rel (%p298) target = $region44
        $region43: #{tpu_custom_call.1} parent=31 // pred_region
          %p301 = scmp.lt.s32.totalorder %s25, 1
          %s302 = scalar_select %p301, %s25, 1
          %s303 = scalar_lea.vmem %s6, %s302
        $region44: #{tpu_custom_call.1} parent=31 // pred_fallthru
          _
      $region32: #{tpu_custom_call.1} parent=5 // pred_fallthru
        _
      %p304 = scmp.le.s32.totalorder 1, %s18
      %p305 = scmp.lt.s32.totalorder %s18, 3
      %p306 = pnand %p304, %p305
      %p307 = pneg %p306
      // Predicated region
      $region45: #{tpu_custom_call.1} parent=5 // pred_check
        _
      $region46: #{tpu_custom_call.1} parent=5 // pred_check_branch
        %309 = sbr.rel (%p306) target = $region48
      $region47: #{tpu_custom_call.1} parent=5 // pred_region
        %s310 = ssub.s32 %s18, 1
        // Predicated region
        $region49: #{tpu_custom_call.1} parent=47 // pred_check
          %p311 = pneg %p82
        $region50: #{tpu_custom_call.1} parent=47 // pred_check_branch
          %313 = sbr.rel (%p311) target = $region52
        $region51: #{tpu_custom_call.1} parent=47 // pred_region
          %314 = dma.done [#allocation4], 512
        $region52: #{tpu_custom_call.1} parent=47 // pred_fallthru
          _
        // Predicated region
        $region53: #{tpu_custom_call.1} parent=47 // pred_check
          %p315 = pneg %p108
        $region54: #{tpu_custom_call.1} parent=47 // pred_check_branch
          %317 = sbr.rel (%p315) target = $region56
        $region55: #{tpu_custom_call.1} parent=47 // pred_region
          %318 = dma.done [#allocation7], 16
        $region56: #{tpu_custom_call.1} parent=47 // pred_fallthru
          _
        %p319 = scmp.lt.s32.totalorder %s27, 1
        %s320 = scalar_select %p319, %s27, 1
        %s321 = smul.addr %s320, 8
        %s322 = scalar_lea.vmem %s0, %s321
        %p323 = pneg %p56
        %p324 = pneg %p53
        %p325 = pneg %p82
        %p326 = pneg %p79
        %p327 = pneg %p108
        %p328 = pneg %p105
        %p329 = pneg %p129
        %p330 = pneg %p126
        %p331 = pneg %p150
        %p332 = pneg %p147
        %p333 = scmp.lt.s32.totalorder %s27, 1
        %s334 = scalar_select %p333, %s27, 1
        %s335 = smul.addr %s334, 8
        %s336 = scalar_lea.vmem %s5, %s335
        %p337 = pneg %p176
        %p338 = pneg %p173
        %p339 = scmp.lt.s32.totalorder %s27, 1
        %s340 = scalar_select %p339, %s27, 1
        %s341 = scalar_lea.vmem %s6, %s340
        %p342 = pneg %p202
        %p343 = pneg %p199
        %p344 = pneg %p230
        %p345 = pneg %p227
        %s346 = sand.u32 %s217, 1
        %s347 = scalar_lea.sflag [#allocation5], %s346
        %s348 = sand.u32 %s217, 1
        %s349 = smul.addr %s348, 32
        %s350 = scalar_lea.vmem [#allocation8], %s349
        %p351 = scmp.lt.s32.totalorder %s27, 1
        %s352 = scalar_select %p351, %s27, 1
        %s353 = smul.addr %s352, 8
        %s354 = scalar_lea.vmem %s0, %s353
        %p355 = scmp.lt.s32.totalorder %s27, 1
        %s356 = scalar_select %p355, %s27, 1
        %s357 = smul.addr %s356, 8
        %s358 = scalar_lea.vmem %s5, %s357
        %p359 = scmp.lt.s32.totalorder %s27, 1
        %s360 = scalar_select %p359, %s27, 1
        %s361 = scalar_lea.vmem %s6, %s360
        %s362 = smul.u32 4, %s28
        %p363 = scmp.eq.s32.totalorder %s28, 0
        // Predicated region
        $region57: #{tpu_custom_call.1} parent=47 // pred_check
          %p364 = pneg %p363
        $region58: #{tpu_custom_call.1} parent=47 // pred_check_branch
          %366 = sbr.rel (%p364) target = $region60
        $region59: #{tpu_custom_call.1} parent=47 // pred_region
          %v367 = vlaneseq
          %v368 = vshrl.u32 %v367, 7
          %v369 = vlaneseq
          %v370 = vand.u32 %v369, 127
          %vm371 = vcmp.gt.s32.totalorder %v368, %v370
          %v372 = vsel %vm371, -2.5e+11, 0.0
          %v373 = vld [vmem:[%s358] sm:$0xff]
          %v374 = vld [vmem:[%s361] sm:$0x1]
          %376 = vset.pattern.permute.xlu0 0
          %377 = vperm.xlu0 %376, %v373
          %v378 = vpop.permute.xlu0 %377
          %v381 = vlaneseq
          %v382 = vshrl.u32 %v381, 7
          %v383 = vsub.s32 0, %v382
          %v384 = vrot.slane %v374, %v383
          %v386 = vmul.f32 %v378, %v384
          %vm387 = vcmp.gt.f32.partialorder %v386, 0.0
          %v388 = vsel %vm387, %v372, -inf
          %vm389 = vcmask 64512
          %390 = vst.msk [vmem:[#allocation2] sm:$0xff] %vm389, %v388
        $region60: #{tpu_custom_call.1} parent=47 // pred_fallthru
          _
        %v391 = vld [vmem:[%s354] sm:$0xff]
        %v392 = vld [vmem:[#allocation3] sm:$0xff]
        %v393 = vld [vmem:[#allocation3 + $0x8] sm:$0xff]
        %v394 = vld [vmem:[#allocation3 + $0x10] sm:$0xff]
        %v395 = vld [vmem:[#allocation3 + $0x18] sm:$0xff]
        %v396 = vld [vmem:[#allocation6] sm:$0x1]
        %v398 = vlaneseq
        %v399 = vshrl.u32 %v398, 7
        %v400 = vsub.s32 0, %v399
        %v401 = vrot.slane %v396, %v400
        %vm403 = vcmask 261120
        %v405 = vsel %vm403, %v391, 0
        %407 = vmatprep.subr.mxu0 0.0
        %408 = vmatpush1.msra.mxu0 %v392
        %409 = vmatprep.subr.mxu0 0.0
        %410 = vmatpush1.msra.mxu0 %v393
        %411 = vmatprep.subr.mxu0 0.0
        %412 = vmatpush1.msra.mxu0 %v394
        %413 = vmatprep.subr.mxu0 0.0
        %414 = vmatpush1.msra.mxu0 %v395
        %415 = vmatprep.subr.mxu0 0.0
        %416 = vmatpush1.msra.mxu0 0.0
        %417 = vmatprep.subr.mxu0 0.0
        %418 = vmatpush1.msra.mxu0 0.0
        %419 = vmatprep.subr.mxu0 0.0
        %420 = vmatpush1.msra.mxu0 0.0
        %421 = vmatprep.subr.mxu0 0.0
        %422 = vmatpush1.msra.mxu0 0.0
        %423 = vmatprep.subr.mxu0 0.0
        %424 = vmatpush1.msra.mxu0 0.0
        %425 = vmatprep.subr.mxu0 0.0
        %426 = vmatpush1.msra.mxu0 0.0
        %427 = vmatprep.subr.mxu0 0.0
        %428 = vmatpush1.msra.mxu0 0.0
        %429 = vmatprep.subr.mxu0 0.0
        %430 = vmatpush1.msra.mxu0 0.0
        %431 = vmatprep.subr.mxu0 0.0
        %432 = vmatpush1.msra.mxu0 0.0
        %433 = vmatprep.subr.mxu0 0.0
        %434 = vmatpush1.msra.mxu0 0.0
        %435 = vmatprep.subr.mxu0 0.0
        %436 = vmatpush1.msra.mxu0 0.0
        %437 = vmatprep.subr.mxu0 0.0
        %438 = vmatpush1.msra.mxu0 0.0
        %439 = vmatprep.subr.mxu0 0.0
        %440 = vmatpush1.msra.mxu0 0.0
        %441 = vmatprep.subr.mxu0 0.0
        %442 = vmatpush1.msra.mxu0 0.0
        %443 = vmatprep.subr.mxu0 0.0
        %444 = vmatpush1.msra.mxu0 0.0
        %445 = vmatprep.subr.mxu0 0.0
        %446 = vmatpush1.msra.mxu0 0.0
        %447 = vmatprep.subr.mxu0 0.0
        %448 = vmatpush1.msra.mxu0 0.0
        %449 = vmatprep.subr.mxu0 0.0
        %450 = vmatpush1.msra.mxu0 0.0
        %451 = vmatprep.subr.mxu0 0.0
        %452 = vmatpush1.msra.mxu0 0.0
        %453 = vmatprep.subr.mxu0 0.0
        %454 = vmatpush1.msra.mxu0 0.0
        %455 = vmatprep.subr.mxu0 0.0
        %456 = vmatpush1.msra.mxu0 0.0
        %457 = vmatprep.subr.mxu0 0.0
        %458 = vmatpush1.msra.mxu0 0.0
        %459 = vmatprep.subr.mxu0 0.0
        %460 = vmatpush1.msra.mxu0 0.0
        %461 = vmatprep.subr.mxu0 0.0
        %462 = vmatpush1.msra.mxu0 0.0
        %463 = vmatprep.subr.mxu0 0.0
        %464 = vmatpush1.msra.mxu0 0.0
        %465 = vmatprep.subr.mxu0 0.0
        %466 = vmatpush1.msra.mxu0 0.0
        %467 = vmatprep.subr.mxu0 0.0
        %468 = vmatpush1.msra.mxu0 0.0
        %469 = vmatprep.subr.mxu0 0.0
        %470 = vmatpush1.msra.mxu0 0.0
        %471 = vmatprep.mubr.f32.mxu0 0.0
        %472 = vmatmul.mubr.f32.gmra.mrb[0].mxu0 %v405
        %v473 = vpop.f32.mrb[0].mxu0
        %v474 = vadd.f32 %v401, %v473
        %v475 = vpop.f32.mrb[0].mxu0
        %476 = vdwg.mxu0
        %v477 = vld [vmem:[%s3] sm:$0xff]
        %v478 = vld [vmem:[%s4] sm:$0xff]
        %v479 = vmul.f32 %v474, %v477
        %481 = vrot.lane.b32.xlu0 %v478, 64
        %v482 = vpop.permute.xlu0 %481
        %v484 = vmul.f32 %v474, %v482
        %486 = vrot.lane.b32.xlu0 %v484, 64
        %v487 = vpop.permute.xlu0 %486
        %v489 = vsub.f32 %v479, %v487
        %491 = vrot.lane.b32.xlu0 %v477, 64
        %v492 = vpop.permute.xlu0 %491
        %v494 = vmul.f32 %v474, %v492
        %v495 = vmul.f32 %v474, %v478
        %497 = vrot.lane.b32.xlu0 %v495, 64
        %v498 = vpop.permute.xlu0 %497
        %v500 = vadd.f32 %v494, %v498
        %v501 = vld [vmem:[#allocation2] sm:$0xff]
        %503 = vrot.lane.b32.xlu0 %v500, 64
        %v504 = vpop.permute.xlu0 %503
        %505 = vrot.lane.b32.xlu0 %v500, 56
        %v506 = vpop.permute.xlu0 %505
        %vm507 = vcmask 64512
        %v508 = vsel %vm507, %v504, 0
        %v510 = vsel %vm507, %v506, 0
        %512 = vmatprep.subr.mxu0 0.0
        %513 = vmatpush1.xpose.msra.mxu0 %v510
        %514 = vmatprep.subr.mxu0 0.0
        %515 = vmatpush1.xpose.msra.mxu0 0.0
        %516 = vmatprep.subr.mxu0 0.0
        %517 = vmatpush1.xpose.msra.mxu0 0.0
        %518 = vmatprep.subr.mxu0 0.0
        %519 = vmatpush1.xpose.msra.mxu0 0.0
        %520 = vmatprep.subr.mxu0 0.0
        %521 = vmatpush1.xpose.msra.mxu0 0.0
        %522 = vmatprep.subr.mxu0 0.0
        %523 = vmatpush1.xpose.msra.mxu0 0.0
        %524 = vmatprep.subr.mxu0 0.0
        %525 = vmatpush1.xpose.msra.mxu0 0.0
        %526 = vmatprep.subr.mxu0 0.0
        %527 = vmatpush1.xpose.msra.mxu0 0.0
        %528 = vmatprep.subr.mxu0 0.0
        %529 = vmatpush1.xpose.msra.mxu0 0.0
        %530 = vmatprep.subr.mxu0 0.0
        %531 = vmatpush1.xpose.msra.mxu0 0.0
        %532 = vmatprep.subr.mxu0 0.0
        %533 = vmatpush1.xpose.msra.mxu0 0.0
        %534 = vmatprep.subr.mxu0 0.0
        %535 = vmatpush1.xpose.msra.mxu0 0.0
        %536 = vmatprep.subr.mxu0 0.0
        %537 = vmatpush1.xpose.msra.mxu0 0.0
        %538 = vmatprep.subr.mxu0 0.0
        %539 = vmatpush1.xpose.msra.mxu0 0.0
        %540 = vmatprep.subr.mxu0 0.0
        %541 = vmatpush1.xpose.msra.mxu0 0.0
        %542 = vmatprep.subr.mxu0 0.0
        %543 = vmatpush1.xpose.msra.mxu0 0.0
        %544 = vmatprep.subr.mxu0 0.0
        %545 = vmatpush1.xpose.msra.mxu0 0.0
        %546 = vmatprep.subr.mxu0 0.0
        %547 = vmatpush1.xpose.msra.mxu0 0.0
        %548 = vmatprep.subr.mxu0 0.0
        %549 = vmatpush1.xpose.msra.mxu0 0.0
        %550 = vmatprep.subr.mxu0 0.0
        %551 = vmatpush1.xpose.msra.mxu0 0.0
        %552 = vmatprep.subr.mxu0 0.0
        %553 = vmatpush1.xpose.msra.mxu0 0.0
        %554 = vmatprep.subr.mxu0 0.0
        %555 = vmatpush1.xpose.msra.mxu0 0.0
        %556 = vmatprep.subr.mxu0 0.0
        %557 = vmatpush1.xpose.msra.mxu0 0.0
        %558 = vmatprep.subr.mxu0 0.0
        %559 = vmatpush1.xpose.msra.mxu0 0.0
        %560 = vmatprep.subr.mxu0 0.0
        %561 = vmatpush1.xpose.msra.mxu0 0.0
        %562 = vmatprep.subr.mxu0 0.0
        %563 = vmatpush1.xpose.msra.mxu0 0.0
        %564 = vmatprep.subr.mxu0 0.0
        %565 = vmatpush1.xpose.msra.mxu0 0.0
        %566 = vmatprep.subr.mxu0 0.0
        %567 = vmatpush1.xpose.msra.mxu0 0.0
        %568 = vmatprep.subr.mxu0 0.0
        %569 = vmatpush1.xpose.msra.mxu0 0.0
        %570 = vmatprep.subr.mxu0 0.0
        %571 = vmatpush1.xpose.msra.mxu0 0.0
        %572 = vmatprep.subr.mxu0 0.0
        %573 = vmatpush1.xpose.msra.mxu0 0.0
        %574 = vmatprep.subr.mxu0 0.0
        %575 = vmatpush1.xpose.msra.mxu0 0.0
        %576 = vmatprep.mubr.f32.mxu0 0.0
        %577 = vmatmul.mubr.f32.gmra.mrb[0].mxu0 %v508
        %v578 = vpop.f32.mrb[0].mxu0
        %v579 = vadd.f32 0.0, %v578
        %v580 = vpop.f32.mrb[0].mxu0
        %581 = vdwg.mxu0
        %583 = vrot.lane.b32.xlu0 %v489, 120
        %v584 = vpop.permute.xlu0 %583
        %v585 = vsel %vm507, %v489, 0
        %v587 = vsel %vm507, %v584, 0
        %589 = vmatprep.subr.mxu0 0.0
        %590 = vmatpush1.xpose.msra.mxu0 %v587
        %591 = vmatprep.subr.mxu0 0.0
        %592 = vmatpush1.xpose.msra.mxu0 0.0
        %593 = vmatprep.subr.mxu0 0.0
        %594 = vmatpush1.xpose.msra.mxu0 0.0
        %595 = vmatprep.subr.mxu0 0.0
        %596 = vmatpush1.xpose.msra.mxu0 0.0
        %597 = vmatprep.subr.mxu0 0.0
        %598 = vmatpush1.xpose.msra.mxu0 0.0
        %599 = vmatprep.subr.mxu0 0.0
        %600 = vmatpush1.xpose.msra.mxu0 0.0
        %601 = vmatprep.subr.mxu0 0.0
        %602 = vmatpush1.xpose.msra.mxu0 0.0
        %603 = vmatprep.subr.mxu0 0.0
        %604 = vmatpush1.xpose.msra.mxu0 0.0
        %605 = vmatprep.subr.mxu0 0.0
        %606 = vmatpush1.xpose.msra.mxu0 0.0
        %607 = vmatprep.subr.mxu0 0.0
        %608 = vmatpush1.xpose.msra.mxu0 0.0
        %609 = vmatprep.subr.mxu0 0.0
        %610 = vmatpush1.xpose.msra.mxu0 0.0
        %611 = vmatprep.subr.mxu0 0.0
        %612 = vmatpush1.xpose.msra.mxu0 0.0
        %613 = vmatprep.subr.mxu0 0.0
        %614 = vmatpush1.xpose.msra.mxu0 0.0
        %615 = vmatprep.subr.mxu0 0.0
        %616 = vmatpush1.xpose.msra.mxu0 0.0
        %617 = vmatprep.subr.mxu0 0.0
        %618 = vmatpush1.xpose.msra.mxu0 0.0
        %619 = vmatprep.subr.mxu0 0.0
        %620 = vmatpush1.xpose.msra.mxu0 0.0
        %621 = vmatprep.subr.mxu0 0.0
        %622 = vmatpush1.xpose.msra.mxu0 0.0
        %623 = vmatprep.subr.mxu0 0.0
        %624 = vmatpush1.xpose.msra.mxu0 0.0
        %625 = vmatprep.subr.mxu0 0.0
        %626 = vmatpush1.xpose.msra.mxu0 0.0
        %627 = vmatprep.subr.mxu0 0.0
        %628 = vmatpush1.xpose.msra.mxu0 0.0
        %629 = vmatprep.subr.mxu0 0.0
        %630 = vmatpush1.xpose.msra.mxu0 0.0
        %631 = vmatprep.subr.mxu0 0.0
        %632 = vmatpush1.xpose.msra.mxu0 0.0
        %633 = vmatprep.subr.mxu0 0.0
        %634 = vmatpush1.xpose.msra.mxu0 0.0
        %635 = vmatprep.subr.mxu0 0.0
        %636 = vmatpush1.xpose.msra.mxu0 0.0
        %637 = vmatprep.subr.mxu0 0.0
        %638 = vmatpush1.xpose.msra.mxu0 0.0
        %639 = vmatprep.subr.mxu0 0.0
        %640 = vmatpush1.xpose.msra.mxu0 0.0
        %641 = vmatprep.subr.mxu0 0.0
        %642 = vmatpush1.xpose.msra.mxu0 0.0
        %643 = vmatprep.subr.mxu0 0.0
        %644 = vmatpush1.xpose.msra.mxu0 0.0
        %645 = vmatprep.subr.mxu0 0.0
        %646 = vmatpush1.xpose.msra.mxu0 0.0
        %647 = vmatprep.subr.mxu0 0.0
        %648 = vmatpush1.xpose.msra.mxu0 0.0
        %649 = vmatprep.subr.mxu0 0.0
        %650 = vmatpush1.xpose.msra.mxu0 0.0
        %651 = vmatprep.subr.mxu0 0.0
        %652 = vmatpush1.xpose.msra.mxu0 0.0
        %653 = vmatprep.mubr.f32.mxu0 0.0
        %654 = vmatmul.mubr.f32.gmra.mrb[0].mxu0 %v585
        %v655 = vpop.f32.mrb[0].mxu0
        %v656 = vadd.f32 %v579, %v655
        %v657 = vpop.f32.mrb[0].mxu0
        %658 = vdwg.mxu0
        %v659 = vadd.f32 %v656, %v501
        %660 = vst.msk [vmem:[%s350] sm:$0xff] %vm507, %v659
        %661 = vrot.lane.b32.xlu0 %v500, 48
        %v662 = vpop.permute.xlu0 %661
        %663 = vrot.lane.b32.xlu0 %v500, 40
        %v664 = vpop.permute.xlu0 %663
        %v665 = vsel %vm507, %v662, 0
        %v667 = vsel %vm507, %v664, 0
        %669 = vmatprep.subr.mxu0 0.0
        %670 = vmatpush1.xpose.msra.mxu0 %v667
        %671 = vmatprep.subr.mxu0 0.0
        %672 = vmatpush1.xpose.msra.mxu0 0.0
        %673 = vmatprep.subr.mxu0 0.0
        %674 = vmatpush1.xpose.msra.mxu0 0.0
        %675 = vmatprep.subr.mxu0 0.0
        %676 = vmatpush1.xpose.msra.mxu0 0.0
        %677 = vmatprep.subr.mxu0 0.0
        %678 = vmatpush1.xpose.msra.mxu0 0.0
        %679 = vmatprep.subr.mxu0 0.0
        %680 = vmatpush1.xpose.msra.mxu0 0.0
        %681 = vmatprep.subr.mxu0 0.0
        %682 = vmatpush1.xpose.msra.mxu0 0.0
        %683 = vmatprep.subr.mxu0 0.0
        %684 = vmatpush1.xpose.msra.mxu0 0.0
        %685 = vmatprep.subr.mxu0 0.0
        %686 = vmatpush1.xpose.msra.mxu0 0.0
        %687 = vmatprep.subr.mxu0 0.0
        %688 = vmatpush1.xpose.msra.mxu0 0.0
        %689 = vmatprep.subr.mxu0 0.0
        %690 = vmatpush1.xpose.msra.mxu0 0.0
        %691 = vmatprep.subr.mxu0 0.0
        %692 = vmatpush1.xpose.msra.mxu0 0.0
        %693 = vmatprep.subr.mxu0 0.0
        %694 = vmatpush1.xpose.msra.mxu0 0.0
        %695 = vmatprep.subr.mxu0 0.0
        %696 = vmatpush1.xpose.msra.mxu0 0.0
        %697 = vmatprep.subr.mxu0 0.0
        %698 = vmatpush1.xpose.msra.mxu0 0.0
        %699 = vmatprep.subr.mxu0 0.0
        %700 = vmatpush1.xpose.msra.mxu0 0.0
        %701 = vmatprep.subr.mxu0 0.0
        %702 = vmatpush1.xpose.msra.mxu0 0.0
        %703 = vmatprep.subr.mxu0 0.0
        %704 = vmatpush1.xpose.msra.mxu0 0.0
        %705 = vmatprep.subr.mxu0 0.0
        %706 = vmatpush1.xpose.msra.mxu0 0.0
        %707 = vmatprep.subr.mxu0 0.0
        %708 = vmatpush1.xpose.msra.mxu0 0.0
        %709 = vmatprep.subr.mxu0 0.0
        %710 = vmatpush1.xpose.msra.mxu0 0.0
        %711 = vmatprep.subr.mxu0 0.0
        %712 = vmatpush1.xpose.msra.mxu0 0.0
        %713 = vmatprep.subr.mxu0 0.0
        %714 = vmatpush1.xpose.msra.mxu0 0.0
        %715 = vmatprep.subr.mxu0 0.0
        %716 = vmatpush1.xpose.msra.mxu0 0.0
        %717 = vmatprep.subr.mxu0 0.0
        %718 = vmatpush1.xpose.msra.mxu0 0.0
        %719 = vmatprep.subr.mxu0 0.0
        %720 = vmatpush1.xpose.msra.mxu0 0.0
        %721 = vmatprep.subr.mxu0 0.0
        %722 = vmatpush1.xpose.msra.mxu0 0.0
        %723 = vmatprep.subr.mxu0 0.0
        %724 = vmatpush1.xpose.msra.mxu0 0.0
        %725 = vmatprep.subr.mxu0 0.0
        %726 = vmatpush1.xpose.msra.mxu0 0.0
        %727 = vmatprep.subr.mxu0 0.0
        %728 = vmatpush1.xpose.msra.mxu0 0.0
        %729 = vmatprep.subr.mxu0 0.0
        %730 = vmatpush1.xpose.msra.mxu0 0.0
        %731 = vmatprep.subr.mxu0 0.0
        %732 = vmatpush1.xpose.msra.mxu0 0.0
        %733 = vmatprep.mubr.f32.mxu0 0.0
        %734 = vmatmul.mubr.f32.gmra.mrb[0].mxu0 %v665
        %v735 = vpop.f32.mrb[0].mxu0
        %v736 = vadd.f32 0.0, %v735
        %v737 = vpop.f32.mrb[0].mxu0
        %738 = vdwg.mxu0
        %739 = vrot.lane.b32.xlu0 %v489, 112
        %v740 = vpop.permute.xlu0 %739
        %741 = vrot.lane.b32.xlu0 %v489, 104
        %v742 = vpop.permute.xlu0 %741
        %v743 = vsel %vm507, %v740, 0
        %v745 = vsel %vm507, %v742, 0
        %747 = vmatprep.subr.mxu0 0.0
        %748 = vmatpush1.xpose.msra.mxu0 %v745
        %749 = vmatprep.subr.mxu0 0.0
        %750 = vmatpush1.xpose.msra.mxu0 0.0
        %751 = vmatprep.subr.mxu0 0.0
        %752 = vmatpush1.xpose.msra.mxu0 0.0
        %753 = vmatprep.subr.mxu0 0.0
        %754 = vmatpush1.xpose.msra.mxu0 0.0
        %755 = vmatprep.subr.mxu0 0.0
        %756 = vmatpush1.xpose.msra.mxu0 0.0
        %757 = vmatprep.subr.mxu0 0.0
        %758 = vmatpush1.xpose.msra.mxu0 0.0
        %759 = vmatprep.subr.mxu0 0.0
        %760 = vmatpush1.xpose.msra.mxu0 0.0
        %761 = vmatprep.subr.mxu0 0.0
        %762 = vmatpush1.xpose.msra.mxu0 0.0
        %763 = vmatprep.subr.mxu0 0.0
        %764 = vmatpush1.xpose.msra.mxu0 0.0
        %765 = vmatprep.subr.mxu0 0.0
        %766 = vmatpush1.xpose.msra.mxu0 0.0
        %767 = vmatprep.subr.mxu0 0.0
        %768 = vmatpush1.xpose.msra.mxu0 0.0
        %769 = vmatprep.subr.mxu0 0.0
        %770 = vmatpush1.xpose.msra.mxu0 0.0
        %771 = vmatprep.subr.mxu0 0.0
        %772 = vmatpush1.xpose.msra.mxu0 0.0
        %773 = vmatprep.subr.mxu0 0.0
        %774 = vmatpush1.xpose.msra.mxu0 0.0
        %775 = vmatprep.subr.mxu0 0.0
        %776 = vmatpush1.xpose.msra.mxu0 0.0
        %777 = vmatprep.subr.mxu0 0.0
        %778 = vmatpush1.xpose.msra.mxu0 0.0
        %779 = vmatprep.subr.mxu0 0.0
        %780 = vmatpush1.xpose.msra.mxu0 0.0
        %781 = vmatprep.subr.mxu0 0.0
        %782 = vmatpush1.xpose.msra.mxu0 0.0
        %783 = vmatprep.subr.mxu0 0.0
        %784 = vmatpush1.xpose.msra.mxu0 0.0
        %785 = vmatprep.subr.mxu0 0.0
        %786 = vmatpush1.xpose.msra.mxu0 0.0
        %787 = vmatprep.subr.mxu0 0.0
        %788 = vmatpush1.xpose.msra.mxu0 0.0
        %789 = vmatprep.subr.mxu0 0.0
        %790 = vmatpush1.xpose.msra.mxu0 0.0
        %791 = vmatprep.subr.mxu0 0.0
        %792 = vmatpush1.xpose.msra.mxu0 0.0
        %793 = vmatprep.subr.mxu0 0.0
        %794 = vmatpush1.xpose.msra.mxu0 0.0
        %795 = vmatprep.subr.mxu0 0.0
        %796 = vmatpush1.xpose.msra.mxu0 0.0
        %797 = vmatprep.subr.mxu0 0.0
        %798 = vmatpush1.xpose.msra.mxu0 0.0
        %799 = vmatprep.subr.mxu0 0.0
        %800 = vmatpush1.xpose.msra.mxu0 0.0
        %801 = vmatprep.subr.mxu0 0.0
        %802 = vmatpush1.xpose.msra.mxu0 0.0
        %803 = vmatprep.subr.mxu0 0.0
        %804 = vmatpush1.xpose.msra.mxu0 0.0
        %805 = vmatprep.subr.mxu0 0.0
        %806 = vmatpush1.xpose.msra.mxu0 0.0
        %807 = vmatprep.subr.mxu0 0.0
        %808 = vmatpush1.xpose.msra.mxu0 0.0
        %809 = vmatprep.subr.mxu0 0.0
        %810 = vmatpush1.xpose.msra.mxu0 0.0
        %811 = vmatprep.mubr.f32.mxu0 0.0
        %812 = vmatmul.mubr.f32.gmra.mrb[0].mxu0 %v743
        %v813 = vpop.f32.mrb[0].mxu0
        %v814 = vadd.f32 %v736, %v813
        %v815 = vpop.f32.mrb[0].mxu0
        %816 = vdwg.mxu0
        %v817 = vadd.f32 %v814, %v501
        %s818 = scalar_lea.vmem %s350, 8 [#allocation8]
        %819 = vst.msk [vmem:[%s818] sm:$0xff] %vm507, %v817
        %820 = vrot.lane.b32.xlu0 %v500, 32
        %v821 = vpop.permute.xlu0 %820
        %822 = vrot.lane.b32.xlu0 %v500, 24
        %v823 = vpop.permute.xlu0 %822
        %v824 = vsel %vm507, %v821, 0
        %v826 = vsel %vm507, %v823, 0
        %828 = vmatprep.subr.mxu0 0.0
        %829 = vmatpush1.xpose.msra.mxu0 %v826
        %830 = vmatprep.subr.mxu0 0.0
        %831 = vmatpush1.xpose.msra.mxu0 0.0
        %832 = vmatprep.subr.mxu0 0.0
        %833 = vmatpush1.xpose.msra.mxu0 0.0
        %834 = vmatprep.subr.mxu0 0.0
        %835 = vmatpush1.xpose.msra.mxu0 0.0
        %836 = vmatprep.subr.mxu0 0.0
        %837 = vmatpush1.xpose.msra.mxu0 0.0
        %838 = vmatprep.subr.mxu0 0.0
        %839 = vmatpush1.xpose.msra.mxu0 0.0
        %840 = vmatprep.subr.mxu0 0.0
        %841 = vmatpush1.xpose.msra.mxu0 0.0
        %842 = vmatprep.subr.mxu0 0.0
        %843 = vmatpush1.xpose.msra.mxu0 0.0
        %844 = vmatprep.subr.mxu0 0.0
        %845 = vmatpush1.xpose.msra.mxu0 0.0
        %846 = vmatprep.subr.mxu0 0.0
        %847 = vmatpush1.xpose.msra.mxu0 0.0
        %848 = vmatprep.subr.mxu0 0.0
        %849 = vmatpush1.xpose.msra.mxu0 0.0
        %850 = vmatprep.subr.mxu0 0.0
        %851 = vmatpush1.xpose.msra.mxu0 0.0
        %852 = vmatprep.subr.mxu0 0.0
        %853 = vmatpush1.xpose.msra.mxu0 0.0
        %854 = vmatprep.subr.mxu0 0.0
        %855 = vmatpush1.xpose.msra.mxu0 0.0
        %856 = vmatprep.subr.mxu0 0.0
        %857 = vmatpush1.xpose.msra.mxu0 0.0
        %858 = vmatprep.subr.mxu0 0.0
        %859 = vmatpush1.xpose.msra.mxu0 0.0
        %860 = vmatprep.subr.mxu0 0.0
        %861 = vmatpush1.xpose.msra.mxu0 0.0
        %862 = vmatprep.subr.mxu0 0.0
        %863 = vmatpush1.xpose.msra.mxu0 0.0
        %864 = vmatprep.subr.mxu0 0.0
        %865 = vmatpush1.xpose.msra.mxu0 0.0
        %866 = vmatprep.subr.mxu0 0.0
        %867 = vmatpush1.xpose.msra.mxu0 0.0
        %868 = vmatprep.subr.mxu0 0.0
        %869 = vmatpush1.xpose.msra.mxu0 0.0
        %870 = vmatprep.subr.mxu0 0.0
        %871 = vmatpush1.xpose.msra.mxu0 0.0
        %872 = vmatprep.subr.mxu0 0.0
        %873 = vmatpush1.xpose.msra.mxu0 0.0
        %874 = vmatprep.subr.mxu0 0.0
        %875 = vmatpush1.xpose.msra.mxu0 0.0
        %876 = vmatprep.subr.mxu0 0.0
        %877 = vmatpush1.xpose.msra.mxu0 0.0
        %878 = vmatprep.subr.mxu0 0.0
        %879 = vmatpush1.xpose.msra.mxu0 0.0
        %880 = vmatprep.subr.mxu0 0.0
        %881 = vmatpush1.xpose.msra.mxu0 0.0
        %882 = vmatprep.subr.mxu0 0.0
        %883 = vmatpush1.xpose.msra.mxu0 0.0
        %884 = vmatprep.subr.mxu0 0.0
        %885 = vmatpush1.xpose.msra.mxu0 0.0
        %886 = vmatprep.subr.mxu0 0.0
        %887 = vmatpush1.xpose.msra.mxu0 0.0
        %888 = vmatprep.subr.mxu0 0.0
        %889 = vmatpush1.xpose.msra.mxu0 0.0
        %890 = vmatprep.subr.mxu0 0.0
        %891 = vmatpush1.xpose.msra.mxu0 0.0
        %892 = vmatprep.mubr.f32.mxu0 0.0
        %893 = vmatmul.mubr.f32.gmra.mrb[0].mxu0 %v824
        %v894 = vpop.f32.mrb[0].mxu0
        %v895 = vadd.f32 0.0, %v894
        %v896 = vpop.f32.mrb[0].mxu0
        %897 = vdwg.mxu0
        %898 = vrot.lane.b32.xlu0 %v489, 96
        %v899 = vpop.permute.xlu0 %898
        %900 = vrot.lane.b32.xlu0 %v489, 88
        %v901 = vpop.permute.xlu0 %900
        %v902 = vsel %vm507, %v899, 0
        %v904 = vsel %vm507, %v901, 0
        %906 = vmatprep.subr.mxu0 0.0
        %907 = vmatpush1.xpose.msra.mxu0 %v904
        %908 = vmatprep.subr.mxu0 0.0
        %909 = vmatpush1.xpose.msra.mxu0 0.0
        %910 = vmatprep.subr.mxu0 0.0
        %911 = vmatpush1.xpose.msra.mxu0 0.0
        %912 = vmatprep.subr.mxu0 0.0
        %913 = vmatpush1.xpose.msra.mxu0 0.0
        %914 = vmatprep.subr.mxu0 0.0
        %915 = vmatpush1.xpose.msra.mxu0 0.0
        %916 = vmatprep.subr.mxu0 0.0
        %917 = vmatpush1.xpose.msra.mxu0 0.0
        %918 = vmatprep.subr.mxu0 0.0
        %919 = vmatpush1.xpose.msra.mxu0 0.0
        %920 = vmatprep.subr.mxu0 0.0
        %921 = vmatpush1.xpose.msra.mxu0 0.0
        %922 = vmatprep.subr.mxu0 0.0
        %923 = vmatpush1.xpose.msra.mxu0 0.0
        %924 = vmatprep.subr.mxu0 0.0
        %925 = vmatpush1.xpose.msra.mxu0 0.0
        %926 = vmatprep.subr.mxu0 0.0
        %927 = vmatpush1.xpose.msra.mxu0 0.0
        %928 = vmatprep.subr.mxu0 0.0
        %929 = vmatpush1.xpose.msra.mxu0 0.0
        %930 = vmatprep.subr.mxu0 0.0
        %931 = vmatpush1.xpose.msra.mxu0 0.0
        %932 = vmatprep.subr.mxu0 0.0
        %933 = vmatpush1.xpose.msra.mxu0 0.0
        %934 = vmatprep.subr.mxu0 0.0
        %935 = vmatpush1.xpose.msra.mxu0 0.0
        %936 = vmatprep.subr.mxu0 0.0
        %937 = vmatpush1.xpose.msra.mxu0 0.0
        %938 = vmatprep.subr.mxu0 0.0
        %939 = vmatpush1.xpose.msra.mxu0 0.0
        %940 = vmatprep.subr.mxu0 0.0
        %941 = vmatpush1.xpose.msra.mxu0 0.0
        %942 = vmatprep.subr.mxu0 0.0
        %943 = vmatpush1.xpose.msra.mxu0 0.0
        %944 = vmatprep.subr.mxu0 0.0
        %945 = vmatpush1.xpose.msra.mxu0 0.0
        %946 = vmatprep.subr.mxu0 0.0
        %947 = vmatpush1.xpose.msra.mxu0 0.0
        %948 = vmatprep.subr.mxu0 0.0
        %949 = vmatpush1.xpose.msra.mxu0 0.0
        %950 = vmatprep.subr.mxu0 0.0
        %951 = vmatpush1.xpose.msra.mxu0 0.0
        %952 = vmatprep.subr.mxu0 0.0
        %953 = vmatpush1.xpose.msra.mxu0 0.0
        %954 = vmatprep.subr.mxu0 0.0
        %955 = vmatpush1.xpose.msra.mxu0 0.0
        %956 = vmatprep.subr.mxu0 0.0
        %957 = vmatpush1.xpose.msra.mxu0 0.0
        %958 = vmatprep.subr.mxu0 0.0
        %959 = vmatpush1.xpose.msra.mxu0 0.0
        %960 = vmatprep.subr.mxu0 0.0
        %961 = vmatpush1.xpose.msra.mxu0 0.0
        %962 = vmatprep.subr.mxu0 0.0
        %963 = vmatpush1.xpose.msra.mxu0 0.0
        %964 = vmatprep.subr.mxu0 0.0
        %965 = vmatpush1.xpose.msra.mxu0 0.0
        %966 = vmatprep.subr.mxu0 0.0
        %967 = vmatpush1.xpose.msra.mxu0 0.0
        %968 = vmatprep.subr.mxu0 0.0
        %969 = vmatpush1.xpose.msra.mxu0 0.0
        %970 = vmatprep.mubr.f32.mxu0 0.0
        %971 = vmatmul.mubr.f32.gmra.mrb[0].mxu0 %v902
        %v972 = vpop.f32.mrb[0].mxu0
        %v973 = vadd.f32 %v895, %v972
        %v974 = vpop.f32.mrb[0].mxu0
        %975 = vdwg.mxu0
        %v976 = vadd.f32 %v973, %v501
        %s977 = scalar_lea.vmem %s350, 16 [#allocation8]
        %978 = vst.msk [vmem:[%s977] sm:$0xff] %vm507, %v976
        %979 = vrot.lane.b32.xlu0 %v500, 16
        %v980 = vpop.permute.xlu0 %979
        %981 = vrot.lane.b32.xlu0 %v500, 8
        %v982 = vpop.permute.xlu0 %981
        %v983 = vsel %vm507, %v980, 0
        %v985 = vsel %vm507, %v982, 0
        %987 = vmatprep.subr.mxu0 0.0
        %988 = vmatpush1.xpose.msra.mxu0 %v985
        %989 = vmatprep.subr.mxu0 0.0
        %990 = vmatpush1.xpose.msra.mxu0 0.0
        %991 = vmatprep.subr.mxu0 0.0
        %992 = vmatpush1.xpose.msra.mxu0 0.0
        %993 = vmatprep.subr.mxu0 0.0
        %994 = vmatpush1.xpose.msra.mxu0 0.0
        %995 = vmatprep.subr.mxu0 0.0
        %996 = vmatpush1.xpose.msra.mxu0 0.0
        %997 = vmatprep.subr.mxu0 0.0
        %998 = vmatpush1.xpose.msra.mxu0 0.0
        %999 = vmatprep.subr.mxu0 0.0
        %1000 = vmatpush1.xpose.msra.mxu0 0.0
        %1001 = vmatprep.subr.mxu0 0.0
        %1002 = vmatpush1.xpose.msra.mxu0 0.0
        %1003 = vmatprep.subr.mxu0 0.0
        %1004 = vmatpush1.xpose.msra.mxu0 0.0
        %1005 = vmatprep.subr.mxu0 0.0
        %1006 = vmatpush1.xpose.msra.mxu0 0.0
        %1007 = vmatprep.subr.mxu0 0.0
        %1008 = vmatpush1.xpose.msra.mxu0 0.0
        %1009 = vmatprep.subr.mxu0 0.0
        %1010 = vmatpush1.xpose.msra.mxu0 0.0
        %1011 = vmatprep.subr.mxu0 0.0
        %1012 = vmatpush1.xpose.msra.mxu0 0.0
        %1013 = vmatprep.subr.mxu0 0.0
        %1014 = vmatpush1.xpose.msra.mxu0 0.0
        %1015 = vmatprep.subr.mxu0 0.0
        %1016 = vmatpush1.xpose.msra.mxu0 0.0
        %1017 = vmatprep.subr.mxu0 0.0
        %1018 = vmatpush1.xpose.msra.mxu0 0.0
        %1019 = vmatprep.subr.mxu0 0.0
        %1020 = vmatpush1.xpose.msra.mxu0 0.0
        %1021 = vmatprep.subr.mxu0 0.0
        %1022 = vmatpush1.xpose.msra.mxu0 0.0
        %1023 = vmatprep.subr.mxu0 0.0
        %1024 = vmatpush1.xpose.msra.mxu0 0.0
        %1025 = vmatprep.subr.mxu0 0.0
        %1026 = vmatpush1.xpose.msra.mxu0 0.0
        %1027 = vmatprep.subr.mxu0 0.0
        %1028 = vmatpush1.xpose.msra.mxu0 0.0
        %1029 = vmatprep.subr.mxu0 0.0
        %1030 = vmatpush1.xpose.msra.mxu0 0.0
        %1031 = vmatprep.subr.mxu0 0.0
        %1032 = vmatpush1.xpose.msra.mxu0 0.0
        %1033 = vmatprep.subr.mxu0 0.0
        %1034 = vmatpush1.xpose.msra.mxu0 0.0
        %1035 = vmatprep.subr.mxu0 0.0
        %1036 = vmatpush1.xpose.msra.mxu0 0.0
        %1037 = vmatprep.subr.mxu0 0.0
        %1038 = vmatpush1.xpose.msra.mxu0 0.0
        %1039 = vmatprep.subr.mxu0 0.0
        %1040 = vmatpush1.xpose.msra.mxu0 0.0
        %1041 = vmatprep.subr.mxu0 0.0
        %1042 = vmatpush1.xpose.msra.mxu0 0.0
        %1043 = vmatprep.subr.mxu0 0.0
        %1044 = vmatpush1.xpose.msra.mxu0 0.0
        %1045 = vmatprep.subr.mxu0 0.0
        %1046 = vmatpush1.xpose.msra.mxu0 0.0
        %1047 = vmatprep.subr.mxu0 0.0
        %1048 = vmatpush1.xpose.msra.mxu0 0.0
        %1049 = vmatprep.subr.mxu0 0.0
        %1050 = vmatpush1.xpose.msra.mxu0 0.0
        %1051 = vmatprep.mubr.f32.mxu0 0.0
        %1052 = vmatmul.mubr.f32.gmra.mrb[0].mxu0 %v983
        %v1053 = vpop.f32.mrb[0].mxu0
        %v1054 = vadd.f32 0.0, %v1053
        %v1055 = vpop.f32.mrb[0].mxu0
        %1056 = vdwg.mxu0
        %1057 = vrot.lane.b32.xlu0 %v489, 80
        %v1058 = vpop.permute.xlu0 %1057
        %1059 = vrot.lane.b32.xlu0 %v489, 72
        %v1060 = vpop.permute.xlu0 %1059
        %v1061 = vsel %vm507, %v1058, 0
        %v1063 = vsel %vm507, %v1060, 0
        %1065 = vmatprep.subr.mxu0 0.0
        %1066 = vmatpush1.xpose.msra.mxu0 %v1063
        %1067 = vmatprep.subr.mxu0 0.0
        %1068 = vmatpush1.xpose.msra.mxu0 0.0
        %1069 = vmatprep.subr.mxu0 0.0
        %1070 = vmatpush1.xpose.msra.mxu0 0.0
        %1071 = vmatprep.subr.mxu0 0.0
        %1072 = vmatpush1.xpose.msra.mxu0 0.0
        %1073 = vmatprep.subr.mxu0 0.0
        %1074 = vmatpush1.xpose.msra.mxu0 0.0
        %1075 = vmatprep.subr.mxu0 0.0
        %1076 = vmatpush1.xpose.msra.mxu0 0.0
        %1077 = vmatprep.subr.mxu0 0.0
        %1078 = vmatpush1.xpose.msra.mxu0 0.0
        %1079 = vmatprep.subr.mxu0 0.0
        %1080 = vmatpush1.xpose.msra.mxu0 0.0
        %1081 = vmatprep.subr.mxu0 0.0
        %1082 = vmatpush1.xpose.msra.mxu0 0.0
        %1083 = vmatprep.subr.mxu0 0.0
        %1084 = vmatpush1.xpose.msra.mxu0 0.0
        %1085 = vmatprep.subr.mxu0 0.0
        %1086 = vmatpush1.xpose.msra.mxu0 0.0
        %1087 = vmatprep.subr.mxu0 0.0
        %1088 = vmatpush1.xpose.msra.mxu0 0.0
        %1089 = vmatprep.subr.mxu0 0.0
        %1090 = vmatpush1.xpose.msra.mxu0 0.0
        %1091 = vmatprep.subr.mxu0 0.0
        %1092 = vmatpush1.xpose.msra.mxu0 0.0
        %1093 = vmatprep.subr.mxu0 0.0
        %1094 = vmatpush1.xpose.msra.mxu0 0.0
        %1095 = vmatprep.subr.mxu0 0.0
        %1096 = vmatpush1.xpose.msra.mxu0 0.0
        %1097 = vmatprep.subr.mxu0 0.0
        %1098 = vmatpush1.xpose.msra.mxu0 0.0
        %1099 = vmatprep.subr.mxu0 0.0
        %1100 = vmatpush1.xpose.msra.mxu0 0.0
        %1101 = vmatprep.subr.mxu0 0.0
        %1102 = vmatpush1.xpose.msra.mxu0 0.0
        %1103 = vmatprep.subr.mxu0 0.0
        %1104 = vmatpush1.xpose.msra.mxu0 0.0
        %1105 = vmatprep.subr.mxu0 0.0
        %1106 = vmatpush1.xpose.msra.mxu0 0.0
        %1107 = vmatprep.subr.mxu0 0.0
        %1108 = vmatpush1.xpose.msra.mxu0 0.0
        %1109 = vmatprep.subr.mxu0 0.0
        %1110 = vmatpush1.xpose.msra.mxu0 0.0
        %1111 = vmatprep.subr.mxu0 0.0
        %1112 = vmatpush1.xpose.msra.mxu0 0.0
        %1113 = vmatprep.subr.mxu0 0.0
        %1114 = vmatpush1.xpose.msra.mxu0 0.0
        %1115 = vmatprep.subr.mxu0 0.0
        %1116 = vmatpush1.xpose.msra.mxu0 0.0
        %1117 = vmatprep.subr.mxu0 0.0
        %1118 = vmatpush1.xpose.msra.mxu0 0.0
        %1119 = vmatprep.subr.mxu0 0.0
        %1120 = vmatpush1.xpose.msra.mxu0 0.0
        %1121 = vmatprep.subr.mxu0 0.0
        %1122 = vmatpush1.xpose.msra.mxu0 0.0
        %1123 = vmatprep.subr.mxu0 0.0
        %1124 = vmatpush1.xpose.msra.mxu0 0.0
        %1125 = vmatprep.subr.mxu0 0.0
        %1126 = vmatpush1.xpose.msra.mxu0 0.0
        %1127 = vmatprep.subr.mxu0 0.0
        %1128 = vmatpush1.xpose.msra.mxu0 0.0
        %1129 = vmatprep.mubr.f32.mxu0 0.0
        %1130 = vmatmul.mubr.f32.gmra.mrb[0].mxu0 %v1061
        %v1131 = vpop.f32.mrb[0].mxu0
        %v1132 = vadd.f32 %v1054, %v1131
        %v1133 = vpop.f32.mrb[0].mxu0
        %1134 = vdwg.mxu0
        %v1135 = vadd.f32 %v1132, %v501
        %s1136 = scalar_lea.vmem %s350, 24 [#allocation8]
        %1137 = vst.msk [vmem:[%s1136] sm:$0xff] %vm507, %v1135
        %s1138 = sand.u32 %s217, 1
        %s1139 = scalar_lea.sflag [#allocation5], %s1138
        %s1140 = sand.u32 %s217, 1
        %s1141 = smul.addr %s1140, 32
        %s1142 = scalar_lea.vmem [#allocation8], %s1141
        // Predicated region
        $region61: #{tpu_custom_call.1} parent=47 // pred_check
          %p1143 = pneg %p227
        $region62: #{tpu_custom_call.1} parent=47 // pred_check_branch
          %1145 = sbr.rel (%p1143) target = $region64
        $region63: #{tpu_custom_call.1} parent=47 // pred_region
          %s1146 = smul.u32 4, %s28
          %s1148 = ssub.s32 512, 512
          %1149 = vsyncadd %s1139, %s1148
          %s1150 = smul.addr %s27, 4
          %s1151 = sadd.s32 %s1146, %s1150
          %s1152 = smul.addr %s1151, 128
          %s1153 = scalar_lea.hbm %s7, %s1152
          %s1154 = sshll.u32 %s1142, 4
          %s1155 = int_to_ptr.vmem [resolvable:$true] %s1154
          %1160 = dma.vmem_to_hbm [thread:$0]  %s1155, 512, %s1153, %s1139, 128, 128, 8
        $region64: #{tpu_custom_call.1} parent=47 // pred_fallthru
          _
      $region48: #{tpu_custom_call.1} parent=5 // pred_fallthru
        _
      %p1161 = scmp.le.s32.totalorder 2, %s18
      // Predicated region
      $region65: #{tpu_custom_call.1} parent=5 // pred_check
        %p1162 = pneg %p1161
      $region66: #{tpu_custom_call.1} parent=5 // pred_check_branch
        %1164 = sbr.rel (%p1162) target = $region68
      $region67: #{tpu_custom_call.1} parent=5 // pred_region
        %s1165 = ssub.s32 %s18, 2
        // Predicated region
        $region69: #{tpu_custom_call.1} parent=67 // pred_check
          %p1166 = pneg %p233
        $region70: #{tpu_custom_call.1} parent=67 // pred_check_branch
          %1168 = sbr.rel (%p1166) target = $region72
        $region71: #{tpu_custom_call.1} parent=67 // pred_region
          %s1169 = sand.u32 %s218, 1
          %s1170 = scalar_lea.sflag [#allocation5], %s1169
          %s1171 = sand.u32 %s218, 1
          %s1172 = smul.addr %s1171, 32
          %s1173 = scalar_lea.vmem [#allocation8], %s1172
          %1174 = dma.done %s1170, 512
        $region72: #{tpu_custom_call.1} parent=67 // pred_fallthru
          _
      $region68: #{tpu_custom_call.1} parent=5 // pred_fallthru
        _
    $region6: #{tpu_custom_call.1} parent=1 // loop_footer
      %s22 = sadd.s32 1, %s18
    $region7: #{tpu_custom_call.1} parent=1 // loop_footer_branch
      %17 = sbr.rel target = $region3
    $region8: #{tpu_custom_call.1} parent=1 // loop_exit
      _
    %1175 = vsyncpa [#allocation4], 1
    %s1176 = scalar_lea.sflag [#allocation4], 1
    %1177 = vsyncpa %s1176, 1
    %1178 = vsyncpa [#allocation7], 1
    %1179 = vsyncpa [#allocation5], 1
    %s1180 = scalar_lea.sflag [#allocation5], 1
    %1181 = vsyncpa %s1180, 1

</llo_original>
